<compile_context>
chip_gen: v7x
topology: tpu7x:2x2x1
jax: 0.10.0
libtpu: 0.0.40
codegen_flags: <defaults>
</compile_context>

<pallas_src>
import functools

import jax
import jax.numpy as jnp
from jax.experimental import pallas as pl
from jax.experimental.pallas import tpu as pltpu

EMBED_DIM = 9
HIDDEN = 18
MLP_HIDDEN = 9
CLASS_NUM = 2
SUBLANE = 8                      # f32 sublane tile

DE = 2 * EMBED_DIM               # 18: packed input lanes  [x_t | x_{S-1-t}]
DH = 2 * HIDDEN                  # 36: packed state lanes  [h_f | h_b]
G8 = 8 * HIDDEN                  # 144: fused pre-activation lanes
#   gate-major / direction-minor column layout:
#   [ i_f | i_b | f_f | f_b | g_f | g_b | o_f | o_b ], each block HIDDEN lanes.

# --- parameter-slab sublane offsets (all 8-aligned) -------------------------
OFF_WIH = 0       # (2E, 8H)  block-diag input projection
OFF_WHH = 24      # (2H, 8H)  block-diag recurrent projection
OFF_BL = 64       # (1, 8H)   fused LSTM bias (b_ih + b_hh), both directions
OFF_W1 = 72       # (2H, 9)   mlp.0 weight^T  (lanes 0:9)
OFF_B1 = 112      # (1, 9)    mlp.0 bias
OFF_W2 = 120      # (9, 2)    mlp.2 weight^T  (lanes 0:2)
OFF_B2 = 136      # (1, 2)    mlp.2 bias
SLAB_ROWS = 144
SLAB_LANES = G8


def _bin_prov_rnn_kernel(x_ref, slab_ref, out_ref, *, seq_len, batch_pad):
    S, Bp = seq_len, batch_pad

    w_ih = slab_ref[OFF_WIH:OFF_WIH + DE, :]            # (2E, 8H)
    w_hh = slab_ref[OFF_WHH:OFF_WHH + DH, :]            # (2H, 8H)
    b_l = slab_ref[OFF_BL:OFF_BL + 1, :]                # (1, 8H)

    # One-shot input projection for both directions and all timesteps.
    # x_ref is time-major (S*Bp, 2E) with [x_t | x_{S-1-t}] packed on lanes,
    # so a single MXU pass yields every per-step pre-activation addend.
    xw = jnp.dot(x_ref[...], w_ih, preferred_element_type=jnp.float32) + b_l

    h2 = jnp.zeros((Bp, DH), jnp.float32)               # [h_f | h_b]
    c2 = jnp.zeros((Bp, DH), jnp.float32)               # [c_f | c_b]

    # Fully-unrolled serial recurrence: one MXU push + two whole-vreg EUP
    # pushes per step for BOTH directions.
    for t in range(S):
        pre = xw[t * Bp:(t + 1) * Bp, :] + jnp.dot(
            h2, w_hh, preferred_element_type=jnp.float32)        # (Bp, 8H)
        sig = jax.nn.sigmoid(pre)
        tah = jnp.tanh(pre)
        i_g = sig[:, 0 * DH:1 * DH]                     # [i_f | i_b]
        f_g = sig[:, 1 * DH:2 * DH]                     # [f_f | f_b]
        g_g = tah[:, 2 * DH:3 * DH]                     # [g_f | g_b]
        o_g = sig[:, 3 * DH:4 * DH]                     # [o_f | o_b]
        c2 = f_g * c2 + i_g * g_g
        h2 = o_g * jnp.tanh(c2)

    # MLP head: h2 is already the [h_fwd | h_bwd] feature map — no concat.
    w1 = slab_ref[OFF_W1:OFF_W1 + DH, 0:MLP_HIDDEN]     # (2H, 9)
    b1 = slab_ref[OFF_B1:OFF_B1 + 1, 0:MLP_HIDDEN]      # (1, 9)
    w2 = slab_ref[OFF_W2:OFF_W2 + MLP_HIDDEN, 0:CLASS_NUM]  # (9, 2)
    b2 = slab_ref[OFF_B2:OFF_B2 + 1, 0:CLASS_NUM]       # (1, 2)

    hid = jnp.maximum(
        jnp.dot(h2, w1, preferred_element_type=jnp.float32) + b1, 0.0)
    logits = jnp.dot(hid, w2, preferred_element_type=jnp.float32) + b2

    # Exact 2-class softmax via sigmoid of the logit difference (no approx
    # reciprocal) -> rows sum to 1 to float precision.
    p1 = jax.nn.sigmoid(logits[:, 1:2] - logits[:, 0:1])
    out_ref[...] = jnp.concatenate([1.0 - p1, p1], axis=-1)


@jax.jit
def bin_prov_rnn(x, slab):
    """x: (batch, seq, embed) f32; slab: packed params. Returns (batch, 2)."""
    x = x.astype(jnp.float32)
    B, S, _ = x.shape
    Bp = max(SUBLANE, ((B + SUBLANE - 1) // SUBLANE) * SUBLANE)

    # Host-side layout prep (plain XLA ops — nothing inside the serial loop):
    x_tm = jnp.transpose(x, (1, 0, 2))                       # (S, B, E)
    x_pair = jnp.concatenate([x_tm, x_tm[::-1]], axis=-1)    # (S, B, 2E)
    x_pair = jnp.pad(x_pair, ((0, 0), (0, Bp - B), (0, 0)))  # pad batch -> 8
    x_flat = x_pair.reshape(S * Bp, DE)                      # (S*Bp, 2E)

    vmem = pl.BlockSpec(memory_space=pltpu.MemorySpace.VMEM)
    kernel = functools.partial(_bin_prov_rnn_kernel, seq_len=S, batch_pad=Bp)
    out = pl.pallas_call(
        kernel,
        out_shape=jax.ShapeDtypeStruct((Bp, CLASS_NUM), jnp.float32),
        in_specs=[vmem, vmem],
        out_specs=vmem,
    )(x_flat, slab)
    return out[:B]


def init_raw_params(key):
    """PyTorch-style uniform init; raw (un-fused) layout for the reference."""
    H, E = HIDDEN, EMBED_DIM
    ks = jax.random.split(key, 12)

    def u(k, shape, bound):
        return jax.random.uniform(k, shape, jnp.float32, -bound, bound)

    kl = 1.0 / (H ** 0.5)
    wih_f = u(ks[0], (4 * H, E), kl)
    whh_f = u(ks[1], (4 * H, H), kl)
    bih_f = u(ks[2], (4 * H,), kl)
    bhh_f = u(ks[3], (4 * H,), kl)
    wih_b = u(ks[4], (4 * H, E), kl)
    whh_b = u(ks[5], (4 * H, H), kl)
    bih_b = u(ks[6], (4 * H,), kl)
    bhh_b = u(ks[7], (4 * H,), kl)
    k1 = 1.0 / ((2 * H) ** 0.5)
    w1 = u(ks[8], (MLP_HIDDEN, 2 * H), k1)
    b1 = u(ks[9], (MLP_HIDDEN,), k1)
    k2 = 1.0 / (MLP_HIDDEN ** 0.5)
    w2 = u(ks[10], (CLASS_NUM, MLP_HIDDEN), k2)
    b2 = u(ks[11], (CLASS_NUM,), k2)
    return (wih_f, whh_f, bih_f, bhh_f,
            wih_b, whh_b, bih_b, bhh_b, w1, b1, w2, b2)


def pack_params(raw):
    """Pack all parameters into one (144, 144) f32 slab for the kernel."""
    (wih_f, whh_f, bih_f, bhh_f,
     wih_b, whh_b, bih_b, bhh_b, w1, b1, w2, b2) = raw
    H, E = HIDDEN, EMBED_DIM
    slab = jnp.zeros((SLAB_ROWS, SLAB_LANES), jnp.float32)

    def place_dir(slab, w_ih, w_hh, b_ih, b_hh, d):
        # d = 0 forward, 1 reverse. PyTorch gate order i, f, g, o.
        for k in range(4):
            col = k * DH + d * H
            slab = slab.at[OFF_WIH + d * E:OFF_WIH + (d + 1) * E,
                           col:col + H].set(w_ih[k * H:(k + 1) * H, :].T)
            slab = slab.at[OFF_WHH + d * H:OFF_WHH + (d + 1) * H,
                           col:col + H].set(w_hh[k * H:(k + 1) * H, :].T)
            slab = slab.at[OFF_BL, col:col + H].set(
                b_ih[k * H:(k + 1) * H] + b_hh[k * H:(k + 1) * H])
        return slab

    slab = place_dir(slab, wih_f, whh_f, bih_f, bhh_f, 0)
    slab = place_dir(slab, wih_b, whh_b, bih_b, bhh_b, 1)
    slab = slab.at[OFF_W1:OFF_W1 + DH, 0:MLP_HIDDEN].set(w1.T)
    slab = slab.at[OFF_B1, 0:MLP_HIDDEN].set(b1)
    slab = slab.at[OFF_W2:OFF_W2 + MLP_HIDDEN, 0:CLASS_NUM].set(w2.T)
    slab = slab.at[OFF_B2, 0:CLASS_NUM].set(b2)
    return slab


def _reference(x, raw):
    """Pure-JAX reference of BinProvRNN.forward using raw PyTorch-layout params."""
    (wih_f, whh_f, bih_f, bhh_f,
     wih_b, whh_b, bih_b, bhh_b, w1, b1, w2, b2) = raw
    B, S, _ = x.shape
    H = HIDDEN

    def run(seq, w_ih, w_hh, b_ih, b_hh):
        h = jnp.zeros((B, H), jnp.float32)
        c = jnp.zeros((B, H), jnp.float32)
        for t in range(S):
            pre = seq[:, t, :] @ w_ih.T + h @ w_hh.T + b_ih + b_hh
            i = jax.nn.sigmoid(pre[:, :H])
            f = jax.nn.sigmoid(pre[:, H:2 * H])
            g = jnp.tanh(pre[:, 2 * H:3 * H])
            o = jax.nn.sigmoid(pre[:, 3 * H:])
            c = f * c + i * g
            h = o * jnp.tanh(c)
        return h

    h_f = run(x, wih_f, whh_f, bih_f, bhh_f)
    h_b = run(x[:, ::-1, :], wih_b, whh_b, bih_b, bhh_b)
    feat = jnp.concatenate([h_f, h_b], axis=1)
    hid = jnp.maximum(feat @ w1.T + b1, 0.0)
    logits = hid @ w2.T + b2
    return jax.nn.softmax(logits, axis=-1)


if __name__ == "__main__":
    key = jax.random.PRNGKey(0)
    k_x, k_p = jax.random.split(key)

    B, S = 4, 8
    x = jax.random.normal(k_x, (B, S, EMBED_DIM), jnp.float32)
    raw = init_raw_params(k_p)
    slab = pack_params(raw)

    out = jax.block_until_ready(bin_prov_rnn(x, slab))

    assert out.shape == (B, CLASS_NUM)
    # Exact 2-class softmax: rows sum to 1 to float precision.
    assert bool(jnp.all(jnp.abs(jnp.sum(out, axis=-1) - 1.0) < 1e-5))
    # Match the pure-JAX reference of the same forward pass.
    ref = _reference(x, raw)
    assert bool(jnp.allclose(out, ref, atol=2e-3, rtol=2e-3))
    print("KERNEL_OK")
</pallas_src>

<mosaic_0001>
module attributes {stable_mosaic.version = 11 : i64} {
  func.func @_bin_prov_rnn_kernel(%arg0: memref<64x18xf32, #tpu.memory_space<vmem>>, %arg1: memref<144x144xf32, #tpu.memory_space<vmem>>, %arg2: memref<8x2xf32, #tpu.memory_space<vmem>>) attributes {dimension_semantics = [], scalar_prefetch = 0 : i64, scratch_operands = 0 : i64, tpu.core_type = #tpu.core_type<tc>} {
    %c0 = arith.constant 0 : index
    %c0_0 = arith.constant 0 : index
    %0 = vector.load %arg1[%c0, %c0_0] : memref<144x144xf32, #tpu.memory_space<vmem>>, vector<18x144xf32>
    %c24 = arith.constant 24 : index
    %c0_1 = arith.constant 0 : index
    %1 = vector.load %arg1[%c24, %c0_1] : memref<144x144xf32, #tpu.memory_space<vmem>>, vector<36x144xf32>
    %c64 = arith.constant 64 : index
    %c0_2 = arith.constant 0 : index
    %2 = vector.load %arg1[%c64, %c0_2] : memref<144x144xf32, #tpu.memory_space<vmem>>, vector<1x144xf32>
    %c0_3 = arith.constant 0 : index
    %c0_4 = arith.constant 0 : index
    %3 = vector.load %arg0[%c0_3, %c0_4] : memref<64x18xf32, #tpu.memory_space<vmem>>, vector<64x18xf32>
    %cst = arith.constant dense<0.000000e+00> : vector<64x144xf32>
    %4 = tpu.matmul %3, %0, %cst {dimension_numbers = #tpu.dot_dimension_numbers<[1], [0], [0], [1], [0, 0, 1, 1], [], []>} : vector<64x18xf32>, vector<18x144xf32>, vector<64x144xf32> -> vector<64x144xf32>
    %5 = vector.broadcast %2 : vector<1x144xf32> to vector<64x144xf32>
    %6 = arith.addf %4, %5 : vector<64x144xf32>
    %cst_5 = arith.constant 0.000000e+00 : f32
    %7 = vector.broadcast %cst_5 : f32 to vector<8x36xf32>
    %cst_6 = arith.constant 0.000000e+00 : f32
    %8 = vector.broadcast %cst_6 : f32 to vector<8x36xf32>
    %9 = vector.extract_strided_slice %6 {offsets = [0, 0], sizes = [8, 144], strides = [1, 1]} : vector<64x144xf32> to vector<8x144xf32>
    %cst_7 = arith.constant dense<0.000000e+00> : vector<8x144xf32>
    %10 = tpu.matmul %7, %1, %cst_7 {dimension_numbers = #tpu.dot_dimension_numbers<[1], [0], [0], [1], [0, 0, 1, 1], [], []>} : vector<8x36xf32>, vector<36x144xf32>, vector<8x144xf32> -> vector<8x144xf32>
    %11 = arith.addf %9, %10 : vector<8x144xf32>
    %12 = arith.negf %11 : vector<8x144xf32>
    %13 = math.exp %12 : vector<8x144xf32>
    %cst_8 = arith.constant 1.000000e+00 : f32
    %14 = vector.broadcast %cst_8 : f32 to vector<8x144xf32>
    %15 = arith.addf %14, %13 : vector<8x144xf32>
    %16 = arith.divf %14, %15 : vector<8x144xf32>
    %17 = math.tanh %11 : vector<8x144xf32>
    %18 = vector.extract_strided_slice %16 {offsets = [0, 0], sizes = [8, 36], strides = [1, 1]} : vector<8x144xf32> to vector<8x36xf32>
    %19 = vector.extract_strided_slice %16 {offsets = [0, 36], sizes = [8, 36], strides = [1, 1]} : vector<8x144xf32> to vector<8x36xf32>
    %20 = vector.extract_strided_slice %17 {offsets = [0, 72], sizes = [8, 36], strides = [1, 1]} : vector<8x144xf32> to vector<8x36xf32>
    %21 = vector.extract_strided_slice %16 {offsets = [0, 108], sizes = [8, 36], strides = [1, 1]} : vector<8x144xf32> to vector<8x36xf32>
    %22 = arith.mulf %19, %8 : vector<8x36xf32>
    %23 = arith.mulf %18, %20 : vector<8x36xf32>
    %24 = arith.addf %22, %23 : vector<8x36xf32>
    %25 = math.tanh %24 : vector<8x36xf32>
    %26 = arith.mulf %21, %25 : vector<8x36xf32>
    %27 = vector.extract_strided_slice %6 {offsets = [8, 0], sizes = [8, 144], strides = [1, 1]} : vector<64x144xf32> to vector<8x144xf32>
    %cst_9 = arith.constant dense<0.000000e+00> : vector<8x144xf32>
    %28 = tpu.matmul %26, %1, %cst_9 {dimension_numbers = #tpu.dot_dimension_numbers<[1], [0], [0], [1], [0, 0, 1, 1], [], []>} : vector<8x36xf32>, vector<36x144xf32>, vector<8x144xf32> -> vector<8x144xf32>
    %29 = arith.addf %27, %28 : vector<8x144xf32>
    %30 = arith.negf %29 : vector<8x144xf32>
    %31 = math.exp %30 : vector<8x144xf32>
    %cst_10 = arith.constant 1.000000e+00 : f32
    %32 = vector.broadcast %cst_10 : f32 to vector<8x144xf32>
    %33 = arith.addf %32, %31 : vector<8x144xf32>
    %34 = arith.divf %32, %33 : vector<8x144xf32>
    %35 = math.tanh %29 : vector<8x144xf32>
    %36 = vector.extract_strided_slice %34 {offsets = [0, 0], sizes = [8, 36], strides = [1, 1]} : vector<8x144xf32> to vector<8x36xf32>
    %37 = vector.extract_strided_slice %34 {offsets = [0, 36], sizes = [8, 36], strides = [1, 1]} : vector<8x144xf32> to vector<8x36xf32>
    %38 = vector.extract_strided_slice %35 {offsets = [0, 72], sizes = [8, 36], strides = [1, 1]} : vector<8x144xf32> to vector<8x36xf32>
    %39 = vector.extract_strided_slice %34 {offsets = [0, 108], sizes = [8, 36], strides = [1, 1]} : vector<8x144xf32> to vector<8x36xf32>
    %40 = arith.mulf %37, %24 : vector<8x36xf32>
    %41 = arith.mulf %36, %38 : vector<8x36xf32>
    %42 = arith.addf %40, %41 : vector<8x36xf32>
    %43 = math.tanh %42 : vector<8x36xf32>
    %44 = arith.mulf %39, %43 : vector<8x36xf32>
    %45 = vector.extract_strided_slice %6 {offsets = [16, 0], sizes = [8, 144], strides = [1, 1]} : vector<64x144xf32> to vector<8x144xf32>
    %cst_11 = arith.constant dense<0.000000e+00> : vector<8x144xf32>
    %46 = tpu.matmul %44, %1, %cst_11 {dimension_numbers = #tpu.dot_dimension_numbers<[1], [0], [0], [1], [0, 0, 1, 1], [], []>} : vector<8x36xf32>, vector<36x144xf32>, vector<8x144xf32> -> vector<8x144xf32>
    %47 = arith.addf %45, %46 : vector<8x144xf32>
    %48 = arith.negf %47 : vector<8x144xf32>
    %49 = math.exp %48 : vector<8x144xf32>
    %cst_12 = arith.constant 1.000000e+00 : f32
    %50 = vector.broadcast %cst_12 : f32 to vector<8x144xf32>
    %51 = arith.addf %50, %49 : vector<8x144xf32>
    %52 = arith.divf %50, %51 : vector<8x144xf32>
    %53 = math.tanh %47 : vector<8x144xf32>
    %54 = vector.extract_strided_slice %52 {offsets = [0, 0], sizes = [8, 36], strides = [1, 1]} : vector<8x144xf32> to vector<8x36xf32>
    %55 = vector.extract_strided_slice %52 {offsets = [0, 36], sizes = [8, 36], strides = [1, 1]} : vector<8x144xf32> to vector<8x36xf32>
    %56 = vector.extract_strided_slice %53 {offsets = [0, 72], sizes = [8, 36], strides = [1, 1]} : vector<8x144xf32> to vector<8x36xf32>
    %57 = vector.extract_strided_slice %52 {offsets = [0, 108], sizes = [8, 36], strides = [1, 1]} : vector<8x144xf32> to vector<8x36xf32>
    %58 = arith.mulf %55, %42 : vector<8x36xf32>
    %59 = arith.mulf %54, %56 : vector<8x36xf32>
    %60 = arith.addf %58, %59 : vector<8x36xf32>
    %61 = math.tanh %60 : vector<8x36xf32>
    %62 = arith.mulf %57, %61 : vector<8x36xf32>
    %63 = vector.extract_strided_slice %6 {offsets = [24, 0], sizes = [8, 144], strides = [1, 1]} : vector<64x144xf32> to vector<8x144xf32>
    %cst_13 = arith.constant dense<0.000000e+00> : vector<8x144xf32>
    %64 = tpu.matmul %62, %1, %cst_13 {dimension_numbers = #tpu.dot_dimension_numbers<[1], [0], [0], [1], [0, 0, 1, 1], [], []>} : vector<8x36xf32>, vector<36x144xf32>, vector<8x144xf32> -> vector<8x144xf32>
    %65 = arith.addf %63, %64 : vector<8x144xf32>
    %66 = arith.negf %65 : vector<8x144xf32>
    %67 = math.exp %66 : vector<8x144xf32>
    %cst_14 = arith.constant 1.000000e+00 : f32
    %68 = vector.broadcast %cst_14 : f32 to vector<8x144xf32>
    %69 = arith.addf %68, %67 : vector<8x144xf32>
    %70 = arith.divf %68, %69 : vector<8x144xf32>
    %71 = math.tanh %65 : vector<8x144xf32>
    %72 = vector.extract_strided_slice %70 {offsets = [0, 0], sizes = [8, 36], strides = [1, 1]} : vector<8x144xf32> to vector<8x36xf32>
    %73 = vector.extract_strided_slice %70 {offsets = [0, 36], sizes = [8, 36], strides = [1, 1]} : vector<8x144xf32> to vector<8x36xf32>
    %74 = vector.extract_strided_slice %71 {offsets = [0, 72], sizes = [8, 36], strides = [1, 1]} : vector<8x144xf32> to vector<8x36xf32>
    %75 = vector.extract_strided_slice %70 {offsets = [0, 108], sizes = [8, 36], strides = [1, 1]} : vector<8x144xf32> to vector<8x36xf32>
    %76 = arith.mulf %73, %60 : vector<8x36xf32>
    %77 = arith.mulf %72, %74 : vector<8x36xf32>
    %78 = arith.addf %76, %77 : vector<8x36xf32>
    %79 = math.tanh %78 : vector<8x36xf32>
    %80 = arith.mulf %75, %79 : vector<8x36xf32>
    %81 = vector.extract_strided_slice %6 {offsets = [32, 0], sizes = [8, 144], strides = [1, 1]} : vector<64x144xf32> to vector<8x144xf32>
    %cst_15 = arith.constant dense<0.000000e+00> : vector<8x144xf32>
    %82 = tpu.matmul %80, %1, %cst_15 {dimension_numbers = #tpu.dot_dimension_numbers<[1], [0], [0], [1], [0, 0, 1, 1], [], []>} : vector<8x36xf32>, vector<36x144xf32>, vector<8x144xf32> -> vector<8x144xf32>
    %83 = arith.addf %81, %82 : vector<8x144xf32>
    %84 = arith.negf %83 : vector<8x144xf32>
    %85 = math.exp %84 : vector<8x144xf32>
    %cst_16 = arith.constant 1.000000e+00 : f32
    %86 = vector.broadcast %cst_16 : f32 to vector<8x144xf32>
    %87 = arith.addf %86, %85 : vector<8x144xf32>
    %88 = arith.divf %86, %87 : vector<8x144xf32>
    %89 = math.tanh %83 : vector<8x144xf32>
    %90 = vector.extract_strided_slice %88 {offsets = [0, 0], sizes = [8, 36], strides = [1, 1]} : vector<8x144xf32> to vector<8x36xf32>
    %91 = vector.extract_strided_slice %88 {offsets = [0, 36], sizes = [8, 36], strides = [1, 1]} : vector<8x144xf32> to vector<8x36xf32>
    %92 = vector.extract_strided_slice %89 {offsets = [0, 72], sizes = [8, 36], strides = [1, 1]} : vector<8x144xf32> to vector<8x36xf32>
    %93 = vector.extract_strided_slice %88 {offsets = [0, 108], sizes = [8, 36], strides = [1, 1]} : vector<8x144xf32> to vector<8x36xf32>
    %94 = arith.mulf %91, %78 : vector<8x36xf32>
    %95 = arith.mulf %90, %92 : vector<8x36xf32>
    %96 = arith.addf %94, %95 : vector<8x36xf32>
    %97 = math.tanh %96 : vector<8x36xf32>
    %98 = arith.mulf %93, %97 : vector<8x36xf32>
    %99 = vector.extract_strided_slice %6 {offsets = [40, 0], sizes = [8, 144], strides = [1, 1]} : vector<64x144xf32> to vector<8x144xf32>
    %cst_17 = arith.constant dense<0.000000e+00> : vector<8x144xf32>
    %100 = tpu.matmul %98, %1, %cst_17 {dimension_numbers = #tpu.dot_dimension_numbers<[1], [0], [0], [1], [0, 0, 1, 1], [], []>} : vector<8x36xf32>, vector<36x144xf32>, vector<8x144xf32> -> vector<8x144xf32>
    %101 = arith.addf %99, %100 : vector<8x144xf32>
    %102 = arith.negf %101 : vector<8x144xf32>
    %103 = math.exp %102 : vector<8x144xf32>
    %cst_18 = arith.constant 1.000000e+00 : f32
    %104 = vector.broadcast %cst_18 : f32 to vector<8x144xf32>
    %105 = arith.addf %104, %103 : vector<8x144xf32>
    %106 = arith.divf %104, %105 : vector<8x144xf32>
    %107 = math.tanh %101 : vector<8x144xf32>
    %108 = vector.extract_strided_slice %106 {offsets = [0, 0], sizes = [8, 36], strides = [1, 1]} : vector<8x144xf32> to vector<8x36xf32>
    %109 = vector.extract_strided_slice %106 {offsets = [0, 36], sizes = [8, 36], strides = [1, 1]} : vector<8x144xf32> to vector<8x36xf32>
    %110 = vector.extract_strided_slice %107 {offsets = [0, 72], sizes = [8, 36], strides = [1, 1]} : vector<8x144xf32> to vector<8x36xf32>
    %111 = vector.extract_strided_slice %106 {offsets = [0, 108], sizes = [8, 36], strides = [1, 1]} : vector<8x144xf32> to vector<8x36xf32>
    %112 = arith.mulf %109, %96 : vector<8x36xf32>
    %113 = arith.mulf %108, %110 : vector<8x36xf32>
    %114 = arith.addf %112, %113 : vector<8x36xf32>
    %115 = math.tanh %114 : vector<8x36xf32>
    %116 = arith.mulf %111, %115 : vector<8x36xf32>
    %117 = vector.extract_strided_slice %6 {offsets = [48, 0], sizes = [8, 144], strides = [1, 1]} : vector<64x144xf32> to vector<8x144xf32>
    %cst_19 = arith.constant dense<0.000000e+00> : vector<8x144xf32>
    %118 = tpu.matmul %116, %1, %cst_19 {dimension_numbers = #tpu.dot_dimension_numbers<[1], [0], [0], [1], [0, 0, 1, 1], [], []>} : vector<8x36xf32>, vector<36x144xf32>, vector<8x144xf32> -> vector<8x144xf32>
    %119 = arith.addf %117, %118 : vector<8x144xf32>
    %120 = arith.negf %119 : vector<8x144xf32>
    %121 = math.exp %120 : vector<8x144xf32>
    %cst_20 = arith.constant 1.000000e+00 : f32
    %122 = vector.broadcast %cst_20 : f32 to vector<8x144xf32>
    %123 = arith.addf %122, %121 : vector<8x144xf32>
    %124 = arith.divf %122, %123 : vector<8x144xf32>
    %125 = math.tanh %119 : vector<8x144xf32>
    %126 = vector.extract_strided_slice %124 {offsets = [0, 0], sizes = [8, 36], strides = [1, 1]} : vector<8x144xf32> to vector<8x36xf32>
    %127 = vector.extract_strided_slice %124 {offsets = [0, 36], sizes = [8, 36], strides = [1, 1]} : vector<8x144xf32> to vector<8x36xf32>
    %128 = vector.extract_strided_slice %125 {offsets = [0, 72], sizes = [8, 36], strides = [1, 1]} : vector<8x144xf32> to vector<8x36xf32>
    %129 = vector.extract_strided_slice %124 {offsets = [0, 108], sizes = [8, 36], strides = [1, 1]} : vector<8x144xf32> to vector<8x36xf32>
    %130 = arith.mulf %127, %114 : vector<8x36xf32>
    %131 = arith.mulf %126, %128 : vector<8x36xf32>
    %132 = arith.addf %130, %131 : vector<8x36xf32>
    %133 = math.tanh %132 : vector<8x36xf32>
    %134 = arith.mulf %129, %133 : vector<8x36xf32>
    %135 = vector.extract_strided_slice %6 {offsets = [56, 0], sizes = [8, 144], strides = [1, 1]} : vector<64x144xf32> to vector<8x144xf32>
    %cst_21 = arith.constant dense<0.000000e+00> : vector<8x144xf32>
    %136 = tpu.matmul %134, %1, %cst_21 {dimension_numbers = #tpu.dot_dimension_numbers<[1], [0], [0], [1], [0, 0, 1, 1], [], []>} : vector<8x36xf32>, vector<36x144xf32>, vector<8x144xf32> -> vector<8x144xf32>
    %137 = arith.addf %135, %136 : vector<8x144xf32>
    %138 = arith.negf %137 : vector<8x144xf32>
    %139 = math.exp %138 : vector<8x144xf32>
    %cst_22 = arith.constant 1.000000e+00 : f32
    %140 = vector.broadcast %cst_22 : f32 to vector<8x144xf32>
    %141 = arith.addf %140, %139 : vector<8x144xf32>
    %142 = arith.divf %140, %141 : vector<8x144xf32>
    %143 = math.tanh %137 : vector<8x144xf32>
    %144 = vector.extract_strided_slice %142 {offsets = [0, 0], sizes = [8, 36], strides = [1, 1]} : vector<8x144xf32> to vector<8x36xf32>
    %145 = vector.extract_strided_slice %142 {offsets = [0, 36], sizes = [8, 36], strides = [1, 1]} : vector<8x144xf32> to vector<8x36xf32>
    %146 = vector.extract_strided_slice %143 {offsets = [0, 72], sizes = [8, 36], strides = [1, 1]} : vector<8x144xf32> to vector<8x36xf32>
    %147 = vector.extract_strided_slice %142 {offsets = [0, 108], sizes = [8, 36], strides = [1, 1]} : vector<8x144xf32> to vector<8x36xf32>
    %148 = arith.mulf %145, %132 : vector<8x36xf32>
    %149 = arith.mulf %144, %146 : vector<8x36xf32>
    %150 = arith.addf %148, %149 : vector<8x36xf32>
    %151 = math.tanh %150 : vector<8x36xf32>
    %152 = arith.mulf %147, %151 : vector<8x36xf32>
    %c72 = arith.constant 72 : index
    %c0_23 = arith.constant 0 : index
    %153 = vector.load %arg1[%c72, %c0_23] : memref<144x144xf32, #tpu.memory_space<vmem>>, vector<36x9xf32>
    %c112 = arith.constant 112 : index
    %c0_24 = arith.constant 0 : index
    %154 = vector.load %arg1[%c112, %c0_24] : memref<144x144xf32, #tpu.memory_space<vmem>>, vector<1x9xf32>
    %c120 = arith.constant 120 : index
    %c0_25 = arith.constant 0 : index
    %155 = vector.load %arg1[%c120, %c0_25] : memref<144x144xf32, #tpu.memory_space<vmem>>, vector<9x2xf32>
    %c136 = arith.constant 136 : index
    %c0_26 = arith.constant 0 : index
    %156 = vector.load %arg1[%c136, %c0_26] : memref<144x144xf32, #tpu.memory_space<vmem>>, vector<1x2xf32>
    %cst_27 = arith.constant dense<0.000000e+00> : vector<8x9xf32>
    %157 = tpu.matmul %152, %153, %cst_27 {dimension_numbers = #tpu.dot_dimension_numbers<[1], [0], [0], [1], [0, 0, 1, 1], [], []>} : vector<8x36xf32>, vector<36x9xf32>, vector<8x9xf32> -> vector<8x9xf32>
    %158 = vector.broadcast %154 : vector<1x9xf32> to vector<8x9xf32>
    %159 = arith.addf %157, %158 : vector<8x9xf32>
    %cst_28 = arith.constant 0.000000e+00 : f32
    %160 = vector.broadcast %cst_28 : f32 to vector<8x9xf32>
    %161 = arith.maximumf %159, %160 : vector<8x9xf32>
    %cst_29 = arith.constant dense<0.000000e+00> : vector<8x2xf32>
    %162 = tpu.matmul %161, %155, %cst_29 {dimension_numbers = #tpu.dot_dimension_numbers<[1], [0], [0], [1], [0, 0, 1, 1], [], []>} : vector<8x9xf32>, vector<9x2xf32>, vector<8x2xf32> -> vector<8x2xf32>
    %163 = vector.broadcast %156 : vector<1x2xf32> to vector<8x2xf32>
    %164 = arith.addf %162, %163 : vector<8x2xf32>
    %165 = vector.extract_strided_slice %164 {offsets = [0, 1], sizes = [8, 1], strides = [1, 1]} : vector<8x2xf32> to vector<8x1xf32>
    %166 = vector.extract_strided_slice %164 {offsets = [0, 0], sizes = [8, 1], strides = [1, 1]} : vector<8x2xf32> to vector<8x1xf32>
    %167 = arith.subf %165, %166 : vector<8x1xf32>
    %168 = arith.negf %167 : vector<8x1xf32>
    %169 = math.exp %168 : vector<8x1xf32>
    %cst_30 = arith.constant 1.000000e+00 : f32
    %170 = vector.broadcast %cst_30 : f32 to vector<8x1xf32>
    %171 = arith.addf %170, %169 : vector<8x1xf32>
    %172 = arith.divf %170, %171 : vector<8x1xf32>
    %cst_31 = arith.constant 1.000000e+00 : f32
    %173 = vector.broadcast %cst_31 : f32 to vector<8x1xf32>
    %174 = arith.subf %173, %172 : vector<8x1xf32>
    %175 = tpu.concatenate %174, %172 in 1 : vector<8x1xf32>, vector<8x1xf32> -> vector<8x2xf32>
    %c0_32 = arith.constant 0 : index
    %c0_33 = arith.constant 0 : index
    %176 = vector.load %arg2[%c0_32, %c0_33] : memref<8x2xf32, #tpu.memory_space<vmem>>, vector<8x2xf32>
    tpu.vector_store %arg2[%c0_32, %c0_33], %175 {strides = array<i32>} : memref<8x2xf32, #tpu.memory_space<vmem>>, vector<8x2xf32>,
    return
  }
}

</mosaic_0001>

<llo_original>
// kernel: bin_prov_rnn.1
$region0: #{bin_prov_rnn.1}
  #allocation0 [shape = 'u32[]', space=smem, size = 0x4, offset = 0x4, fixed_abs, tag = 'smem constant byte address 0x4 - core index']
  #allocation1 [shape = 'u32[144,128]{1,0:T(1,128)}', space=vmem, size = 0x12000, scoped, tag = 'internal scratch']
  %s0 = inlined_call_operand.vmem [shape: f32[64,18], index: 0, kind: input, shape index: {}]
  %s1 = inlined_call_operand.vmem [shape: f32[144,144], index: 1, kind: input, shape index: {}]
  %s2 = inlined_call_operand.vmem [shape: f32[8,2], index: 2, kind: output, shape index: {}]
  %s3 = sld [smem:[#allocation0]]
  $region18: #{bin_prov_rnn.1} parent=0
    _
  %s5 = ssub.s32 1, %s3
  %s6 = scalar_select 0, %s5, %s3
  // Predicated region
  $region2: #{bin_prov_rnn.1} parent=0 // pred_check
    _
  $region3: #{bin_prov_rnn.1} parent=0 // pred_check_branch
    %8 = sbr.rel (0) target = $region5
  $region4: #{bin_prov_rnn.1} parent=0 // pred_region
    _
  $region5: #{bin_prov_rnn.1} parent=0 // pred_fallthru
    _
  // Predicated region
  $region6: #{bin_prov_rnn.1} parent=0 // pred_check
    _
  $region7: #{bin_prov_rnn.1} parent=0 // pred_check_branch
    %10 = sbr.rel (0) target = $region9
  $region8: #{bin_prov_rnn.1} parent=0 // pred_region
    _
  $region9: #{bin_prov_rnn.1} parent=0 // pred_fallthru
    _
  %v11 = vld [vmem:[%s1] sm:$0xff]
  %v12 = vld [vmem:[%s1 + $0x8] sm:$0xff]
  %v13 = vld [vmem:[%s1 + $0x10] sm:$0xff]
  %v14 = vld [vmem:[%s1 + $0x18] sm:$0xff]
  %v15 = vld [vmem:[%s1 + $0x20] sm:$0x3]
  %v16 = vld [vmem:[%s1 + $0x28] sm:$0x3]
  %v17 = vld [vmem:[%s1 + $0x30] sm:$0xff]
  %v18 = vld [vmem:[%s1 + $0x38] sm:$0xff]
  %v19 = vld [vmem:[%s1 + $0x40] sm:$0xff]
  %v20 = vld [vmem:[%s1 + $0x48] sm:$0xff]
  %v21 = vld [vmem:[%s1 + $0x50] sm:$0xff]
  %v22 = vld [vmem:[%s1 + $0x58] sm:$0xff]
  %v23 = vld [vmem:[%s1 + $0x60] sm:$0xff]
  %v24 = vld [vmem:[%s1 + $0x68] sm:$0xff]
  %v25 = vld [vmem:[%s1 + $0x70] sm:$0xf]
  %v26 = vld [vmem:[%s1 + $0x78] sm:$0xf]
  %s27 = scalar_lea.vmem %s1, 128
  %v28 = vld [vmem:[%s27] ss:$8 sm:$0x3]
  %v29 = vld [vmem:[%s0] sm:$0xff]
  %v30 = vld [vmem:[%s0 + $0x8] sm:$0xff]
  %v31 = vld [vmem:[%s0 + $0x10] sm:$0xff]
  %v32 = vld [vmem:[%s0 + $0x18] sm:$0xff]
  %v33 = vld [vmem:[%s0 + $0x20] sm:$0xff]
  %v34 = vld [vmem:[%s0 + $0x28] sm:$0xff]
  %v35 = vld [vmem:[%s0 + $0x30] sm:$0xff]
  %v36 = vld [vmem:[%s0 + $0x38] sm:$0xff]
  %v38 = vlaneseq
  %v39 = vshrl.u32 %v38, 7
  %v40 = vsub.s32 0, %v39
  %v41 = vrot.slane %v28, %v40
  %v42 = vlaneseq
  %v43 = vshrl.u32 %v42, 7
  %v44 = vsub.s32 1, %v43
  %v45 = vrot.slane %v28, %v44
  %vm48 = vcmask 146432
  %v50 = vsel %vm48, %v29, 0
  %v53 = vsel %vm48, %v30, 0
  %v56 = vsel %vm48, %v31, 0
  %v59 = vsel %vm48, %v32, 0
  %v62 = vsel %vm48, %v33, 0
  %v65 = vsel %vm48, %v34, 0
  %v68 = vsel %vm48, %v35, 0
  %v71 = vsel %vm48, %v36, 0
  %vm73 = vcmask 1041408
  %v75 = vsel %vm73, %v15, 0
  %v78 = vsel %vm73, %v16, 0
  %80 = vmatprep.subr.mxu0 %v12
  %81 = vmatpush1.msra.mxu0 %v11
  %82 = vmatprep.subr.mxu0 %v14
  %83 = vmatpush1.msra.mxu0 %v13
  %84 = vmatprep.subr.mxu0 %v78
  %85 = vmatpush1.msra.mxu0 %v75
  %86 = vmatprep.subr.mxu0 0.0
  %87 = vmatpush1.msra.mxu0 0.0
  %88 = vmatprep.subr.mxu0 0.0
  %89 = vmatpush1.msra.mxu0 0.0
  %90 = vmatprep.subr.mxu0 0.0
  %91 = vmatpush1.msra.mxu0 0.0
  %92 = vmatprep.subr.mxu0 0.0
  %93 = vmatpush1.msra.mxu0 0.0
  %94 = vmatprep.subr.mxu0 0.0
  %95 = vmatpush1.msra.mxu0 0.0
  %96 = vmatprep.subr.mxu0 0.0
  %97 = vmatpush1.msra.mxu0 0.0
  %98 = vmatprep.subr.mxu0 0.0
  %99 = vmatpush1.msra.mxu0 0.0
  %100 = vmatprep.subr.mxu0 0.0
  %101 = vmatpush1.msra.mxu0 0.0
  %102 = vmatprep.subr.mxu0 0.0
  %103 = vmatpush1.msra.mxu0 0.0
  %104 = vmatprep.subr.mxu0 0.0
  %105 = vmatpush1.msra.mxu0 0.0
  %106 = vmatprep.subr.mxu0 0.0
  %107 = vmatpush1.msra.mxu0 0.0
  %108 = vmatprep.subr.mxu0 0.0
  %109 = vmatpush1.msra.mxu0 0.0
  %110 = vmatprep.subr.mxu0 0.0
  %111 = vmatpush1.msra.mxu0 0.0
  %112 = vmatprep.subr.mxu0 0.0
  %113 = vmatpush1.msra.mxu0 0.0
  %114 = vmatprep.subr.mxu0 0.0
  %115 = vmatpush1.msra.mxu0 0.0
  %116 = vmatprep.subr.mxu0 0.0
  %117 = vmatpush1.msra.mxu0 0.0
  %118 = vmatprep.subr.mxu0 0.0
  %119 = vmatpush1.msra.mxu0 0.0
  %120 = vmatprep.subr.mxu0 0.0
  %121 = vmatpush1.msra.mxu0 0.0
  %122 = vmatprep.subr.mxu0 0.0
  %123 = vmatpush1.msra.mxu0 0.0
  %124 = vmatprep.subr.mxu0 0.0
  %125 = vmatpush1.msra.mxu0 0.0
  %126 = vmatprep.subr.mxu0 0.0
  %127 = vmatpush1.msra.mxu0 0.0
  %128 = vmatprep.subr.mxu0 0.0
  %129 = vmatpush1.msra.mxu0 0.0
  %130 = vmatprep.subr.mxu0 0.0
  %131 = vmatpush1.msra.mxu0 0.0
  %132 = vmatprep.subr.mxu0 0.0
  %133 = vmatpush1.msra.mxu0 0.0
  %134 = vmatprep.subr.mxu0 0.0
  %135 = vmatpush1.msra.mxu0 0.0
  %136 = vmatprep.subr.mxu0 0.0
  %137 = vmatpush1.msra.mxu0 0.0
  %138 = vmatprep.subr.mxu0 0.0
  %139 = vmatpush1.msra.mxu0 0.0
  %140 = vmatprep.subr.mxu0 0.0
  %141 = vmatpush1.msra.mxu0 0.0
  %142 = vmatprep.subr.mxu0 0.0
  %143 = vmatpush1.msra.mxu0 0.0
  %144 = vmatprep.mubr.f32.mxu0 0.0
  %145 = vmatmul.mubr.f32.gmra.mrb[0].mxu0 %v50
  %v146 = vpop.f32.mrb[0].mxu0
  %v147 = vadd.f32 %v41, %v146
  %v148 = vpop.f32.mrb[0].mxu0
  %v149 = vadd.f32 %v45, %v148
  %150 = vmatprep.mubr.f32.mxu0 0.0
  %151 = vmatmul.mubr.f32.gmra.mrb[0].mxu0 %v53
  %v152 = vpop.f32.mrb[0].mxu0
  %v153 = vadd.f32 %v41, %v152
  %v154 = vpop.f32.mrb[0].mxu0
  %v155 = vadd.f32 %v45, %v154
  %156 = vmatprep.mubr.f32.mxu0 0.0
  %157 = vmatmul.mubr.f32.gmra.mrb[0].mxu0 %v56
  %v158 = vpop.f32.mrb[0].mxu0
  %v159 = vadd.f32 %v41, %v158
  %v160 = vpop.f32.mrb[0].mxu0
  %v161 = vadd.f32 %v45, %v160
  %162 = vmatprep.mubr.f32.mxu0 0.0
  %163 = vmatmul.mubr.f32.gmra.mrb[0].mxu0 %v59
  %v164 = vpop.f32.mrb[0].mxu0
  %v165 = vadd.f32 %v41, %v164
  %v166 = vpop.f32.mrb[0].mxu0
  %v167 = vadd.f32 %v45, %v166
  %168 = vmatprep.mubr.f32.mxu0 0.0
  %169 = vmatmul.mubr.f32.gmra.mrb[0].mxu0 %v62
  %v170 = vpop.f32.mrb[0].mxu0
  %v171 = vadd.f32 %v41, %v170
  %v172 = vpop.f32.mrb[0].mxu0
  %v173 = vadd.f32 %v45, %v172
  %174 = vmatprep.mubr.f32.mxu0 0.0
  %175 = vmatmul.mubr.f32.gmra.mrb[0].mxu0 %v65
  %v176 = vpop.f32.mrb[0].mxu0
  %v177 = vadd.f32 %v41, %v176
  %v178 = vpop.f32.mrb[0].mxu0
  %v179 = vadd.f32 %v45, %v178
  %180 = vmatprep.mubr.f32.mxu0 0.0
  %181 = vmatmul.mubr.f32.gmra.mrb[0].mxu0 %v68
  %v182 = vpop.f32.mrb[0].mxu0
  %v183 = vadd.f32 %v41, %v182
  %v184 = vpop.f32.mrb[0].mxu0
  %v185 = vadd.f32 %v45, %v184
  %186 = vmatprep.mubr.f32.mxu0 0.0
  %187 = vmatmul.mubr.f32.gmra.mrb[0].mxu0 %v71
  %v188 = vpop.f32.mrb[0].mxu0
  %v189 = vadd.f32 %v41, %v188
  %v190 = vpop.f32.mrb[0].mxu0
  %v191 = vadd.f32 %v45, %v190
  %192 = vdwg.mxu0
  %vm193 = vcmask 293888
  %v195 = vsel %vm193, 0.0, 0
  %vm197 = vcmask 1043456
  %v199 = vsel %vm197, %v25, 0
  %v202 = vsel %vm197, %v26, 0
  %204 = vmatprep.subr.mxu0 %v18
  %205 = vmatpush1.msra.mxu0 %v17
  %206 = vmatprep.subr.mxu0 %v20
  %207 = vmatpush1.msra.mxu0 %v19
  %208 = vmatprep.subr.mxu0 %v22
  %209 = vmatpush1.msra.mxu0 %v21
  %210 = vmatprep.subr.mxu0 %v24
  %211 = vmatpush1.msra.mxu0 %v23
  %212 = vmatprep.subr.mxu0 %v202
  %213 = vmatpush1.msra.mxu0 %v199
  %214 = vmatprep.subr.mxu0 0.0
  %215 = vmatpush1.msra.mxu0 0.0
  %216 = vmatprep.subr.mxu0 0.0
  %217 = vmatpush1.msra.mxu0 0.0
  %218 = vmatprep.subr.mxu0 0.0
  %219 = vmatpush1.msra.mxu0 0.0
  %220 = vmatprep.subr.mxu0 0.0
  %221 = vmatpush1.msra.mxu0 0.0
  %222 = vmatprep.subr.mxu0 0.0
  %223 = vmatpush1.msra.mxu0 0.0
  %224 = vmatprep.subr.mxu0 0.0
  %225 = vmatpush1.msra.mxu0 0.0
  %226 = vmatprep.subr.mxu0 0.0
  %227 = vmatpush1.msra.mxu0 0.0
  %228 = vmatprep.subr.mxu0 0.0
  %229 = vmatpush1.msra.mxu0 0.0
  %230 = vmatprep.subr.mxu0 0.0
  %231 = vmatpush1.msra.mxu0 0.0
  %232 = vmatprep.subr.mxu0 0.0
  %233 = vmatpush1.msra.mxu0 0.0
  %234 = vmatprep.subr.mxu0 0.0
  %235 = vmatpush1.msra.mxu0 0.0
  %236 = vmatprep.subr.mxu0 0.0
  %237 = vmatpush1.msra.mxu0 0.0
  %238 = vmatprep.subr.mxu0 0.0
  %239 = vmatpush1.msra.mxu0 0.0
  %240 = vmatprep.subr.mxu0 0.0
  %241 = vmatpush1.msra.mxu0 0.0
  %242 = vmatprep.subr.mxu0 0.0
  %243 = vmatpush1.msra.mxu0 0.0
  %244 = vmatprep.subr.mxu0 0.0
  %245 = vmatpush1.msra.mxu0 0.0
  %246 = vmatprep.subr.mxu0 0.0
  %247 = vmatpush1.msra.mxu0 0.0
  %248 = vmatprep.subr.mxu0 0.0
  %249 = vmatpush1.msra.mxu0 0.0
  %250 = vmatprep.subr.mxu0 0.0
  %251 = vmatpush1.msra.mxu0 0.0
  %252 = vmatprep.subr.mxu0 0.0
  %253 = vmatpush1.msra.mxu0 0.0
  %254 = vmatprep.subr.mxu0 0.0
  %255 = vmatpush1.msra.mxu0 0.0
  %256 = vmatprep.subr.mxu0 0.0
  %257 = vmatpush1.msra.mxu0 0.0
  %258 = vmatprep.subr.mxu0 0.0
  %259 = vmatpush1.msra.mxu0 0.0
  %260 = vmatprep.subr.mxu0 0.0
  %261 = vmatpush1.msra.mxu0 0.0
  %262 = vmatprep.subr.mxu0 0.0
  %263 = vmatpush1.msra.mxu0 0.0
  %264 = vmatprep.subr.mxu0 0.0
  %265 = vmatpush1.msra.mxu0 0.0
  %266 = vmatprep.subr.mxu0 0.0
  %267 = vmatpush1.msra.mxu0 0.0
  %268 = vmatprep.mubr.f32.mxu0 0.0
  %269 = vmatmul.mubr.f32.gmra.mrb[0].mxu0 %v195
  %v270 = vpop.f32.mrb[0].mxu0
  %v271 = vadd.f32 0.0, %v270
  %v272 = vpop.f32.mrb[0].mxu0
  %v273 = vadd.f32 0.0, %v272
  %274 = vdwg.mxu0
  %v275 = vadd.f32 %v147, %v271
  %v276 = vadd.f32 %v149, %v273
  %v277 = vxor.u32 %v275, 2147483648
  %v278 = vxor.u32 %v276, 2147483648
  %v279 = vmul.f32 %v277, 1.442695
  %v280 = vpow.pop %v279
  %v281 = vmul.f32 %v278, 1.442695
  %v282 = vpow.pop %v281
  %v283 = vadd.f32 %v280, 1.0
  %v284 = vadd.f32 %v282, 1.0
  %v285 = vrcp.pop %v283
  %v286 = vmul.f32 1.0, %v285
  %v287 = vrcp.pop %v284
  %v288 = vmul.f32 1.0, %v287
  %v289 = vtanh.pop %v275
  %v290 = vmul.f32 %v286, 0.0
  %292 = vrot.lane.b32.xlu0 %v289, 56
  %v293 = vpop.permute.xlu0 %292
  %v295 = vmul.f32 %v286, %v293
  %297 = vrot.lane.b32.xlu0 %v295, 36
  %v298 = vpop.permute.xlu0 %297
  %v300 = vadd.f32 %v290, %v298
  %v301 = vtanh.pop %v300
  %303 = vrot.lane.b32.xlu0 %v301, 72
  %v304 = vpop.permute.xlu0 %303
  %v306 = vmul.f32 %v286, %v304
  %v307 = vmul.f32 %v288, %v304
  %310 = vrot.lane.b32.xlu0 %v306, 20
  %v311 = vpop.permute.xlu0 %310
  %312 = vrot.lane.b32.xlu0 %v307, 20
  %v313 = vpop.permute.xlu0 %312
  %vm314 = vcmask 162816
  %v315 = vsel %vm314, %v311, %v313
  %v316 = vsel %vm193, %v315, 0
  %318 = vmatprep.subr.mxu0 %v18
  %319 = vmatpush1.msra.mxu0 %v17
  %320 = vmatprep.subr.mxu0 %v20
  %321 = vmatpush1.msra.mxu0 %v19
  %322 = vmatprep.subr.mxu0 %v22
  %323 = vmatpush1.msra.mxu0 %v21
  %324 = vmatprep.subr.mxu0 %v24
  %325 = vmatpush1.msra.mxu0 %v23
  %326 = vmatprep.subr.mxu0 %v202
  %327 = vmatpush1.msra.mxu0 %v199
  %328 = vmatprep.subr.mxu0 0.0
  %329 = vmatpush1.msra.mxu0 0.0
  %330 = vmatprep.subr.mxu0 0.0
  %331 = vmatpush1.msra.mxu0 0.0
  %332 = vmatprep.subr.mxu0 0.0
  %333 = vmatpush1.msra.mxu0 0.0
  %334 = vmatprep.subr.mxu0 0.0
  %335 = vmatpush1.msra.mxu0 0.0
  %336 = vmatprep.subr.mxu0 0.0
  %337 = vmatpush1.msra.mxu0 0.0
  %338 = vmatprep.subr.mxu0 0.0
  %339 = vmatpush1.msra.mxu0 0.0
  %340 = vmatprep.subr.mxu0 0.0
  %341 = vmatpush1.msra.mxu0 0.0
  %342 = vmatprep.subr.mxu0 0.0
  %343 = vmatpush1.msra.mxu0 0.0
  %344 = vmatprep.subr.mxu0 0.0
  %345 = vmatpush1.msra.mxu0 0.0
  %346 = vmatprep.subr.mxu0 0.0
  %347 = vmatpush1.msra.mxu0 0.0
  %348 = vmatprep.subr.mxu0 0.0
  %349 = vmatpush1.msra.mxu0 0.0
  %350 = vmatprep.subr.mxu0 0.0
  %351 = vmatpush1.msra.mxu0 0.0
  %352 = vmatprep.subr.mxu0 0.0
  %353 = vmatpush1.msra.mxu0 0.0
  %354 = vmatprep.subr.mxu0 0.0
  %355 = vmatpush1.msra.mxu0 0.0
  %356 = vmatprep.subr.mxu0 0.0
  %357 = vmatpush1.msra.mxu0 0.0
  %358 = vmatprep.subr.mxu0 0.0
  %359 = vmatpush1.msra.mxu0 0.0
  %360 = vmatprep.subr.mxu0 0.0
  %361 = vmatpush1.msra.mxu0 0.0
  %362 = vmatprep.subr.mxu0 0.0
  %363 = vmatpush1.msra.mxu0 0.0
  %364 = vmatprep.subr.mxu0 0.0
  %365 = vmatpush1.msra.mxu0 0.0
  %366 = vmatprep.subr.mxu0 0.0
  %367 = vmatpush1.msra.mxu0 0.0
  %368 = vmatprep.subr.mxu0 0.0
  %369 = vmatpush1.msra.mxu0 0.0
  %370 = vmatprep.subr.mxu0 0.0
  %371 = vmatpush1.msra.mxu0 0.0
  %372 = vmatprep.subr.mxu0 0.0
  %373 = vmatpush1.msra.mxu0 0.0
  %374 = vmatprep.subr.mxu0 0.0
  %375 = vmatpush1.msra.mxu0 0.0
  %376 = vmatprep.subr.mxu0 0.0
  %377 = vmatpush1.msra.mxu0 0.0
  %378 = vmatprep.subr.mxu0 0.0
  %379 = vmatpush1.msra.mxu0 0.0
  %380 = vmatprep.subr.mxu0 0.0
  %381 = vmatpush1.msra.mxu0 0.0
  %382 = vmatprep.mubr.f32.mxu0 0.0
  %383 = vmatmul.mubr.f32.gmra.mrb[0].mxu0 %v316
  %v384 = vpop.f32.mrb[0].mxu0
  %v385 = vadd.f32 0.0, %v384
  %v386 = vpop.f32.mrb[0].mxu0
  %v387 = vadd.f32 0.0, %v386
  %388 = vdwg.mxu0
  %v389 = vadd.f32 %v153, %v385
  %v390 = vadd.f32 %v155, %v387
  %v391 = vxor.u32 %v389, 2147483648
  %v392 = vxor.u32 %v390, 2147483648
  %v393 = vmul.f32 %v391, 1.442695
  %v394 = vpow.pop %v393
  %v395 = vmul.f32 %v392, 1.442695
  %v396 = vpow.pop %v395
  %v397 = vadd.f32 %v394, 1.0
  %v398 = vadd.f32 %v396, 1.0
  %v399 = vrcp.pop %v397
  %v400 = vmul.f32 1.0, %v399
  %v401 = vrcp.pop %v398
  %v402 = vmul.f32 1.0, %v401
  %v403 = vtanh.pop %v389
  %v404 = vmul.f32 %v400, %v300
  %406 = vrot.lane.b32.xlu0 %v403, 56
  %v407 = vpop.permute.xlu0 %406
  %v409 = vmul.f32 %v400, %v407
  %411 = vrot.lane.b32.xlu0 %v409, 36
  %v412 = vpop.permute.xlu0 %411
  %v414 = vadd.f32 %v404, %v412
  %v415 = vtanh.pop %v414
  %417 = vrot.lane.b32.xlu0 %v415, 72
  %v418 = vpop.permute.xlu0 %417
  %v420 = vmul.f32 %v400, %v418
  %v421 = vmul.f32 %v402, %v418
  %424 = vrot.lane.b32.xlu0 %v420, 20
  %v425 = vpop.permute.xlu0 %424
  %426 = vrot.lane.b32.xlu0 %v421, 20
  %v427 = vpop.permute.xlu0 %426
  %v428 = vsel %vm314, %v425, %v427
  %v429 = vsel %vm193, %v428, 0
  %431 = vmatprep.subr.mxu0 %v18
  %432 = vmatpush1.msra.mxu0 %v17
  %433 = vmatprep.subr.mxu0 %v20
  %434 = vmatpush1.msra.mxu0 %v19
  %435 = vmatprep.subr.mxu0 %v22
  %436 = vmatpush1.msra.mxu0 %v21
  %437 = vmatprep.subr.mxu0 %v24
  %438 = vmatpush1.msra.mxu0 %v23
  %439 = vmatprep.subr.mxu0 %v202
  %440 = vmatpush1.msra.mxu0 %v199
  %441 = vmatprep.subr.mxu0 0.0
  %442 = vmatpush1.msra.mxu0 0.0
  %443 = vmatprep.subr.mxu0 0.0
  %444 = vmatpush1.msra.mxu0 0.0
  %445 = vmatprep.subr.mxu0 0.0
  %446 = vmatpush1.msra.mxu0 0.0
  %447 = vmatprep.subr.mxu0 0.0
  %448 = vmatpush1.msra.mxu0 0.0
  %449 = vmatprep.subr.mxu0 0.0
  %450 = vmatpush1.msra.mxu0 0.0
  %451 = vmatprep.subr.mxu0 0.0
  %452 = vmatpush1.msra.mxu0 0.0
  %453 = vmatprep.subr.mxu0 0.0
  %454 = vmatpush1.msra.mxu0 0.0
  %455 = vmatprep.subr.mxu0 0.0
  %456 = vmatpush1.msra.mxu0 0.0
  %457 = vmatprep.subr.mxu0 0.0
  %458 = vmatpush1.msra.mxu0 0.0
  %459 = vmatprep.subr.mxu0 0.0
  %460 = vmatpush1.msra.mxu0 0.0
  %461 = vmatprep.subr.mxu0 0.0
  %462 = vmatpush1.msra.mxu0 0.0
  %463 = vmatprep.subr.mxu0 0.0
  %464 = vmatpush1.msra.mxu0 0.0
  %465 = vmatprep.subr.mxu0 0.0
  %466 = vmatpush1.msra.mxu0 0.0
  %467 = vmatprep.subr.mxu0 0.0
  %468 = vmatpush1.msra.mxu0 0.0
  %469 = vmatprep.subr.mxu0 0.0
  %470 = vmatpush1.msra.mxu0 0.0
  %471 = vmatprep.subr.mxu0 0.0
  %472 = vmatpush1.msra.mxu0 0.0
  %473 = vmatprep.subr.mxu0 0.0
  %474 = vmatpush1.msra.mxu0 0.0
  %475 = vmatprep.subr.mxu0 0.0
  %476 = vmatpush1.msra.mxu0 0.0
  %477 = vmatprep.subr.mxu0 0.0
  %478 = vmatpush1.msra.mxu0 0.0
  %479 = vmatprep.subr.mxu0 0.0
  %480 = vmatpush1.msra.mxu0 0.0
  %481 = vmatprep.subr.mxu0 0.0
  %482 = vmatpush1.msra.mxu0 0.0
  %483 = vmatprep.subr.mxu0 0.0
  %484 = vmatpush1.msra.mxu0 0.0
  %485 = vmatprep.subr.mxu0 0.0
  %486 = vmatpush1.msra.mxu0 0.0
  %487 = vmatprep.subr.mxu0 0.0
  %488 = vmatpush1.msra.mxu0 0.0
  %489 = vmatprep.subr.mxu0 0.0
  %490 = vmatpush1.msra.mxu0 0.0
  %491 = vmatprep.subr.mxu0 0.0
  %492 = vmatpush1.msra.mxu0 0.0
  %493 = vmatprep.subr.mxu0 0.0
  %494 = vmatpush1.msra.mxu0 0.0
  %495 = vmatprep.mubr.f32.mxu0 0.0
  %496 = vmatmul.mubr.f32.gmra.mrb[0].mxu0 %v429
  %v497 = vpop.f32.mrb[0].mxu0
  %v498 = vadd.f32 0.0, %v497
  %v499 = vpop.f32.mrb[0].mxu0
  %v500 = vadd.f32 0.0, %v499
  %501 = vdwg.mxu0
  %v502 = vadd.f32 %v159, %v498
  %v503 = vadd.f32 %v161, %v500
  %v504 = vxor.u32 %v502, 2147483648
  %v505 = vxor.u32 %v503, 2147483648
  %v506 = vmul.f32 %v504, 1.442695
  %v507 = vpow.pop %v506
  %v508 = vmul.f32 %v505, 1.442695
  %v509 = vpow.pop %v508
  %v510 = vadd.f32 %v507, 1.0
  %v511 = vadd.f32 %v509, 1.0
  %v512 = vrcp.pop %v510
  %v513 = vmul.f32 1.0, %v512
  %v514 = vrcp.pop %v511
  %v515 = vmul.f32 1.0, %v514
  %v516 = vtanh.pop %v502
  %v517 = vmul.f32 %v513, %v414
  %519 = vrot.lane.b32.xlu0 %v516, 56
  %v520 = vpop.permute.xlu0 %519
  %v522 = vmul.f32 %v513, %v520
  %524 = vrot.lane.b32.xlu0 %v522, 36
  %v525 = vpop.permute.xlu0 %524
  %v527 = vadd.f32 %v517, %v525
  %v528 = vtanh.pop %v527
  %530 = vrot.lane.b32.xlu0 %v528, 72
  %v531 = vpop.permute.xlu0 %530
  %v533 = vmul.f32 %v513, %v531
  %v534 = vmul.f32 %v515, %v531
  %537 = vrot.lane.b32.xlu0 %v533, 20
  %v538 = vpop.permute.xlu0 %537
  %539 = vrot.lane.b32.xlu0 %v534, 20
  %v540 = vpop.permute.xlu0 %539
  %v541 = vsel %vm314, %v538, %v540
  %v542 = vsel %vm193, %v541, 0
  %544 = vmatprep.subr.mxu0 %v18
  %545 = vmatpush1.msra.mxu0 %v17
  %546 = vmatprep.subr.mxu0 %v20
  %547 = vmatpush1.msra.mxu0 %v19
  %548 = vmatprep.subr.mxu0 %v22
  %549 = vmatpush1.msra.mxu0 %v21
  %550 = vmatprep.subr.mxu0 %v24
  %551 = vmatpush1.msra.mxu0 %v23
  %552 = vmatprep.subr.mxu0 %v202
  %553 = vmatpush1.msra.mxu0 %v199
  %554 = vmatprep.subr.mxu0 0.0
  %555 = vmatpush1.msra.mxu0 0.0
  %556 = vmatprep.subr.mxu0 0.0
  %557 = vmatpush1.msra.mxu0 0.0
  %558 = vmatprep.subr.mxu0 0.0
  %559 = vmatpush1.msra.mxu0 0.0
  %560 = vmatprep.subr.mxu0 0.0
  %561 = vmatpush1.msra.mxu0 0.0
  %562 = vmatprep.subr.mxu0 0.0
  %563 = vmatpush1.msra.mxu0 0.0
  %564 = vmatprep.subr.mxu0 0.0
  %565 = vmatpush1.msra.mxu0 0.0
  %566 = vmatprep.subr.mxu0 0.0
  %567 = vmatpush1.msra.mxu0 0.0
  %568 = vmatprep.subr.mxu0 0.0
  %569 = vmatpush1.msra.mxu0 0.0
  %570 = vmatprep.subr.mxu0 0.0
  %571 = vmatpush1.msra.mxu0 0.0
  %572 = vmatprep.subr.mxu0 0.0
  %573 = vmatpush1.msra.mxu0 0.0
  %574 = vmatprep.subr.mxu0 0.0
  %575 = vmatpush1.msra.mxu0 0.0
  %576 = vmatprep.subr.mxu0 0.0
  %577 = vmatpush1.msra.mxu0 0.0
  %578 = vmatprep.subr.mxu0 0.0
  %579 = vmatpush1.msra.mxu0 0.0
  %580 = vmatprep.subr.mxu0 0.0
  %581 = vmatpush1.msra.mxu0 0.0
  %582 = vmatprep.subr.mxu0 0.0
  %583 = vmatpush1.msra.mxu0 0.0
  %584 = vmatprep.subr.mxu0 0.0
  %585 = vmatpush1.msra.mxu0 0.0
  %586 = vmatprep.subr.mxu0 0.0
  %587 = vmatpush1.msra.mxu0 0.0
  %588 = vmatprep.subr.mxu0 0.0
  %589 = vmatpush1.msra.mxu0 0.0
  %590 = vmatprep.subr.mxu0 0.0
  %591 = vmatpush1.msra.mxu0 0.0
  %592 = vmatprep.subr.mxu0 0.0
  %593 = vmatpush1.msra.mxu0 0.0
  %594 = vmatprep.subr.mxu0 0.0
  %595 = vmatpush1.msra.mxu0 0.0
  %596 = vmatprep.subr.mxu0 0.0
  %597 = vmatpush1.msra.mxu0 0.0
  %598 = vmatprep.subr.mxu0 0.0
  %599 = vmatpush1.msra.mxu0 0.0
  %600 = vmatprep.subr.mxu0 0.0
  %601 = vmatpush1.msra.mxu0 0.0
  %602 = vmatprep.subr.mxu0 0.0
  %603 = vmatpush1.msra.mxu0 0.0
  %604 = vmatprep.subr.mxu0 0.0
  %605 = vmatpush1.msra.mxu0 0.0
  %606 = vmatprep.subr.mxu0 0.0
  %607 = vmatpush1.msra.mxu0 0.0
  %608 = vmatprep.mubr.f32.mxu0 0.0
  %609 = vmatmul.mubr.f32.gmra.mrb[0].mxu0 %v542
  %v610 = vpop.f32.mrb[0].mxu0
  %v611 = vadd.f32 0.0, %v610
  %v612 = vpop.f32.mrb[0].mxu0
  %v613 = vadd.f32 0.0, %v612
  %614 = vdwg.mxu0
  %v615 = vadd.f32 %v165, %v611
  %v616 = vadd.f32 %v167, %v613
  %v617 = vxor.u32 %v615, 2147483648
  %v618 = vxor.u32 %v616, 2147483648
  %v619 = vmul.f32 %v617, 1.442695
  %v620 = vpow.pop %v619
  %v621 = vmul.f32 %v618, 1.442695
  %v622 = vpow.pop %v621
  %v623 = vadd.f32 %v620, 1.0
  %v624 = vadd.f32 %v622, 1.0
  %v625 = vrcp.pop %v623
  %v626 = vmul.f32 1.0, %v625
  %v627 = vrcp.pop %v624
  %v628 = vmul.f32 1.0, %v627
  %v629 = vtanh.pop %v615
  %v630 = vmul.f32 %v626, %v527
  %632 = vrot.lane.b32.xlu0 %v629, 56
  %v633 = vpop.permute.xlu0 %632
  %v635 = vmul.f32 %v626, %v633
  %637 = vrot.lane.b32.xlu0 %v635, 36
  %v638 = vpop.permute.xlu0 %637
  %v640 = vadd.f32 %v630, %v638
  %v641 = vtanh.pop %v640
  %643 = vrot.lane.b32.xlu0 %v641, 72
  %v644 = vpop.permute.xlu0 %643
  %v646 = vmul.f32 %v626, %v644
  %v647 = vmul.f32 %v628, %v644
  %650 = vrot.lane.b32.xlu0 %v646, 20
  %v651 = vpop.permute.xlu0 %650
  %652 = vrot.lane.b32.xlu0 %v647, 20
  %v653 = vpop.permute.xlu0 %652
  %v654 = vsel %vm314, %v651, %v653
  %v655 = vsel %vm193, %v654, 0
  %657 = vmatprep.subr.mxu0 %v18
  %658 = vmatpush1.msra.mxu0 %v17
  %659 = vmatprep.subr.mxu0 %v20
  %660 = vmatpush1.msra.mxu0 %v19
  %661 = vmatprep.subr.mxu0 %v22
  %662 = vmatpush1.msra.mxu0 %v21
  %663 = vmatprep.subr.mxu0 %v24
  %664 = vmatpush1.msra.mxu0 %v23
  %665 = vmatprep.subr.mxu0 %v202
  %666 = vmatpush1.msra.mxu0 %v199
  %667 = vmatprep.subr.mxu0 0.0
  %668 = vmatpush1.msra.mxu0 0.0
  %669 = vmatprep.subr.mxu0 0.0
  %670 = vmatpush1.msra.mxu0 0.0
  %671 = vmatprep.subr.mxu0 0.0
  %672 = vmatpush1.msra.mxu0 0.0
  %673 = vmatprep.subr.mxu0 0.0
  %674 = vmatpush1.msra.mxu0 0.0
  %675 = vmatprep.subr.mxu0 0.0
  %676 = vmatpush1.msra.mxu0 0.0
  %677 = vmatprep.subr.mxu0 0.0
  %678 = vmatpush1.msra.mxu0 0.0
  %679 = vmatprep.subr.mxu0 0.0
  %680 = vmatpush1.msra.mxu0 0.0
  %681 = vmatprep.subr.mxu0 0.0
  %682 = vmatpush1.msra.mxu0 0.0
  %683 = vmatprep.subr.mxu0 0.0
  %684 = vmatpush1.msra.mxu0 0.0
  %685 = vmatprep.subr.mxu0 0.0
  %686 = vmatpush1.msra.mxu0 0.0
  %687 = vmatprep.subr.mxu0 0.0
  %688 = vmatpush1.msra.mxu0 0.0
  %689 = vmatprep.subr.mxu0 0.0
  %690 = vmatpush1.msra.mxu0 0.0
  %691 = vmatprep.subr.mxu0 0.0
  %692 = vmatpush1.msra.mxu0 0.0
  %693 = vmatprep.subr.mxu0 0.0
  %694 = vmatpush1.msra.mxu0 0.0
  %695 = vmatprep.subr.mxu0 0.0
  %696 = vmatpush1.msra.mxu0 0.0
  %697 = vmatprep.subr.mxu0 0.0
  %698 = vmatpush1.msra.mxu0 0.0
  %699 = vmatprep.subr.mxu0 0.0
  %700 = vmatpush1.msra.mxu0 0.0
  %701 = vmatprep.subr.mxu0 0.0
  %702 = vmatpush1.msra.mxu0 0.0
  %703 = vmatprep.subr.mxu0 0.0
  %704 = vmatpush1.msra.mxu0 0.0
  %705 = vmatprep.subr.mxu0 0.0
  %706 = vmatpush1.msra.mxu0 0.0
  %707 = vmatprep.subr.mxu0 0.0
  %708 = vmatpush1.msra.mxu0 0.0
  %709 = vmatprep.subr.mxu0 0.0
  %710 = vmatpush1.msra.mxu0 0.0
  %711 = vmatprep.subr.mxu0 0.0
  %712 = vmatpush1.msra.mxu0 0.0
  %713 = vmatprep.subr.mxu0 0.0
  %714 = vmatpush1.msra.mxu0 0.0
  %715 = vmatprep.subr.mxu0 0.0
  %716 = vmatpush1.msra.mxu0 0.0
  %717 = vmatprep.subr.mxu0 0.0
  %718 = vmatpush1.msra.mxu0 0.0
  %719 = vmatprep.subr.mxu0 0.0
  %720 = vmatpush1.msra.mxu0 0.0
  %721 = vmatprep.mubr.f32.mxu0 0.0
  %722 = vmatmul.mubr.f32.gmra.mrb[0].mxu0 %v655
  %v723 = vpop.f32.mrb[0].mxu0
  %v724 = vadd.f32 0.0, %v723
  %v725 = vpop.f32.mrb[0].mxu0
  %v726 = vadd.f32 0.0, %v725
  %727 = vdwg.mxu0
  %v728 = vadd.f32 %v171, %v724
  %v729 = vadd.f32 %v173, %v726
  %v730 = vxor.u32 %v728, 2147483648
  %v731 = vxor.u32 %v729, 2147483648
  %v732 = vmul.f32 %v730, 1.442695
  %v733 = vpow.pop %v732
  %v734 = vmul.f32 %v731, 1.442695
  %v735 = vpow.pop %v734
  %v736 = vadd.f32 %v733, 1.0
  %v737 = vadd.f32 %v735, 1.0
  %v738 = vrcp.pop %v736
  %v739 = vmul.f32 1.0, %v738
  %v740 = vrcp.pop %v737
  %v741 = vmul.f32 1.0, %v740
  %v742 = vtanh.pop %v728
  %v743 = vmul.f32 %v739, %v640
  %745 = vrot.lane.b32.xlu0 %v742, 56
  %v746 = vpop.permute.xlu0 %745
  %v748 = vmul.f32 %v739, %v746
  %750 = vrot.lane.b32.xlu0 %v748, 36
  %v751 = vpop.permute.xlu0 %750
  %v753 = vadd.f32 %v743, %v751
  %v754 = vtanh.pop %v753
  %756 = vrot.lane.b32.xlu0 %v754, 72
  %v757 = vpop.permute.xlu0 %756
  %v759 = vmul.f32 %v739, %v757
  %v760 = vmul.f32 %v741, %v757
  %763 = vrot.lane.b32.xlu0 %v759, 20
  %v764 = vpop.permute.xlu0 %763
  %765 = vrot.lane.b32.xlu0 %v760, 20
  %v766 = vpop.permute.xlu0 %765
  %v767 = vsel %vm314, %v764, %v766
  %v768 = vsel %vm193, %v767, 0
  %770 = vmatprep.subr.mxu0 %v18
  %771 = vmatpush1.msra.mxu0 %v17
  %772 = vmatprep.subr.mxu0 %v20
  %773 = vmatpush1.msra.mxu0 %v19
  %774 = vmatprep.subr.mxu0 %v22
  %775 = vmatpush1.msra.mxu0 %v21
  %776 = vmatprep.subr.mxu0 %v24
  %777 = vmatpush1.msra.mxu0 %v23
  %778 = vmatprep.subr.mxu0 %v202
  %779 = vmatpush1.msra.mxu0 %v199
  %780 = vmatprep.subr.mxu0 0.0
  %781 = vmatpush1.msra.mxu0 0.0
  %782 = vmatprep.subr.mxu0 0.0
  %783 = vmatpush1.msra.mxu0 0.0
  %784 = vmatprep.subr.mxu0 0.0
  %785 = vmatpush1.msra.mxu0 0.0
  %786 = vmatprep.subr.mxu0 0.0
  %787 = vmatpush1.msra.mxu0 0.0
  %788 = vmatprep.subr.mxu0 0.0
  %789 = vmatpush1.msra.mxu0 0.0
  %790 = vmatprep.subr.mxu0 0.0
  %791 = vmatpush1.msra.mxu0 0.0
  %792 = vmatprep.subr.mxu0 0.0
  %793 = vmatpush1.msra.mxu0 0.0
  %794 = vmatprep.subr.mxu0 0.0
  %795 = vmatpush1.msra.mxu0 0.0
  %796 = vmatprep.subr.mxu0 0.0
  %797 = vmatpush1.msra.mxu0 0.0
  %798 = vmatprep.subr.mxu0 0.0
  %799 = vmatpush1.msra.mxu0 0.0
  %800 = vmatprep.subr.mxu0 0.0
  %801 = vmatpush1.msra.mxu0 0.0
  %802 = vmatprep.subr.mxu0 0.0
  %803 = vmatpush1.msra.mxu0 0.0
  %804 = vmatprep.subr.mxu0 0.0
  %805 = vmatpush1.msra.mxu0 0.0
  %806 = vmatprep.subr.mxu0 0.0
  %807 = vmatpush1.msra.mxu0 0.0
  %808 = vmatprep.subr.mxu0 0.0
  %809 = vmatpush1.msra.mxu0 0.0
  %810 = vmatprep.subr.mxu0 0.0
  %811 = vmatpush1.msra.mxu0 0.0
  %812 = vmatprep.subr.mxu0 0.0
  %813 = vmatpush1.msra.mxu0 0.0
  %814 = vmatprep.subr.mxu0 0.0
  %815 = vmatpush1.msra.mxu0 0.0
  %816 = vmatprep.subr.mxu0 0.0
  %817 = vmatpush1.msra.mxu0 0.0
  %818 = vmatprep.subr.mxu0 0.0
  %819 = vmatpush1.msra.mxu0 0.0
  %820 = vmatprep.subr.mxu0 0.0
  %821 = vmatpush1.msra.mxu0 0.0
  %822 = vmatprep.subr.mxu0 0.0
  %823 = vmatpush1.msra.mxu0 0.0
  %824 = vmatprep.subr.mxu0 0.0
  %825 = vmatpush1.msra.mxu0 0.0
  %826 = vmatprep.subr.mxu0 0.0
  %827 = vmatpush1.msra.mxu0 0.0
  %828 = vmatprep.subr.mxu0 0.0
  %829 = vmatpush1.msra.mxu0 0.0
  %830 = vmatprep.subr.mxu0 0.0
  %831 = vmatpush1.msra.mxu0 0.0
  %832 = vmatprep.subr.mxu0 0.0
  %833 = vmatpush1.msra.mxu0 0.0
  %834 = vmatprep.mubr.f32.mxu0 0.0
  %835 = vmatmul.mubr.f32.gmra.mrb[0].mxu0 %v768
  %v836 = vpop.f32.mrb[0].mxu0
  %v837 = vadd.f32 0.0, %v836
  %v838 = vpop.f32.mrb[0].mxu0
  %v839 = vadd.f32 0.0, %v838
  %840 = vdwg.mxu0
  %v841 = vadd.f32 %v177, %v837
  %v842 = vadd.f32 %v179, %v839
  %v843 = vxor.u32 %v841, 2147483648
  %v844 = vxor.u32 %v842, 2147483648
  %v845 = vmul.f32 %v843, 1.442695
  %v846 = vpow.pop %v845
  %v847 = vmul.f32 %v844, 1.442695
  %v848 = vpow.pop %v847
  %v849 = vadd.f32 %v846, 1.0
  %v850 = vadd.f32 %v848, 1.0
  %v851 = vrcp.pop %v849
  %v852 = vmul.f32 1.0, %v851
  %v853 = vrcp.pop %v850
  %v854 = vmul.f32 1.0, %v853
  %v855 = vtanh.pop %v841
  %v856 = vmul.f32 %v852, %v753
  %858 = vrot.lane.b32.xlu0 %v855, 56
  %v859 = vpop.permute.xlu0 %858
  %v861 = vmul.f32 %v852, %v859
  %863 = vrot.lane.b32.xlu0 %v861, 36
  %v864 = vpop.permute.xlu0 %863
  %v866 = vadd.f32 %v856, %v864
  %v867 = vtanh.pop %v866
  %869 = vrot.lane.b32.xlu0 %v867, 72
  %v870 = vpop.permute.xlu0 %869
  %v872 = vmul.f32 %v852, %v870
  %v873 = vmul.f32 %v854, %v870
  %876 = vrot.lane.b32.xlu0 %v872, 20
  %v877 = vpop.permute.xlu0 %876
  %878 = vrot.lane.b32.xlu0 %v873, 20
  %v879 = vpop.permute.xlu0 %878
  %v880 = vsel %vm314, %v877, %v879
  %v881 = vsel %vm193, %v880, 0
  %883 = vmatprep.subr.mxu0 %v18
  %884 = vmatpush1.msra.mxu0 %v17
  %885 = vmatprep.subr.mxu0 %v20
  %886 = vmatpush1.msra.mxu0 %v19
  %887 = vmatprep.subr.mxu0 %v22
  %888 = vmatpush1.msra.mxu0 %v21
  %889 = vmatprep.subr.mxu0 %v24
  %890 = vmatpush1.msra.mxu0 %v23
  %891 = vmatprep.subr.mxu0 %v202
  %892 = vmatpush1.msra.mxu0 %v199
  %893 = vmatprep.subr.mxu0 0.0
  %894 = vmatpush1.msra.mxu0 0.0
  %895 = vmatprep.subr.mxu0 0.0
  %896 = vmatpush1.msra.mxu0 0.0
  %897 = vmatprep.subr.mxu0 0.0
  %898 = vmatpush1.msra.mxu0 0.0
  %899 = vmatprep.subr.mxu0 0.0
  %900 = vmatpush1.msra.mxu0 0.0
  %901 = vmatprep.subr.mxu0 0.0
  %902 = vmatpush1.msra.mxu0 0.0
  %903 = vmatprep.subr.mxu0 0.0
  %904 = vmatpush1.msra.mxu0 0.0
  %905 = vmatprep.subr.mxu0 0.0
  %906 = vmatpush1.msra.mxu0 0.0
  %907 = vmatprep.subr.mxu0 0.0
  %908 = vmatpush1.msra.mxu0 0.0
  %909 = vmatprep.subr.mxu0 0.0
  %910 = vmatpush1.msra.mxu0 0.0
  %911 = vmatprep.subr.mxu0 0.0
  %912 = vmatpush1.msra.mxu0 0.0
  %913 = vmatprep.subr.mxu0 0.0
  %914 = vmatpush1.msra.mxu0 0.0
  %915 = vmatprep.subr.mxu0 0.0
  %916 = vmatpush1.msra.mxu0 0.0
  %917 = vmatprep.subr.mxu0 0.0
  %918 = vmatpush1.msra.mxu0 0.0
  %919 = vmatprep.subr.mxu0 0.0
  %920 = vmatpush1.msra.mxu0 0.0
  %921 = vmatprep.subr.mxu0 0.0
  %922 = vmatpush1.msra.mxu0 0.0
  %923 = vmatprep.subr.mxu0 0.0
  %924 = vmatpush1.msra.mxu0 0.0
  %925 = vmatprep.subr.mxu0 0.0
  %926 = vmatpush1.msra.mxu0 0.0
  %927 = vmatprep.subr.mxu0 0.0
  %928 = vmatpush1.msra.mxu0 0.0
  %929 = vmatprep.subr.mxu0 0.0
  %930 = vmatpush1.msra.mxu0 0.0
  %931 = vmatprep.subr.mxu0 0.0
  %932 = vmatpush1.msra.mxu0 0.0
  %933 = vmatprep.subr.mxu0 0.0
  %934 = vmatpush1.msra.mxu0 0.0
  %935 = vmatprep.subr.mxu0 0.0
  %936 = vmatpush1.msra.mxu0 0.0
  %937 = vmatprep.subr.mxu0 0.0
  %938 = vmatpush1.msra.mxu0 0.0
  %939 = vmatprep.subr.mxu0 0.0
  %940 = vmatpush1.msra.mxu0 0.0
  %941 = vmatprep.subr.mxu0 0.0
  %942 = vmatpush1.msra.mxu0 0.0
  %943 = vmatprep.subr.mxu0 0.0
  %944 = vmatpush1.msra.mxu0 0.0
  %945 = vmatprep.subr.mxu0 0.0
  %946 = vmatpush1.msra.mxu0 0.0
  %947 = vmatprep.mubr.f32.mxu0 0.0
  %948 = vmatmul.mubr.f32.gmra.mrb[0].mxu0 %v881
  %v949 = vpop.f32.mrb[0].mxu0
  %v950 = vadd.f32 0.0, %v949
  %v951 = vpop.f32.mrb[0].mxu0
  %v952 = vadd.f32 0.0, %v951
  %953 = vdwg.mxu0
  %v954 = vadd.f32 %v183, %v950
  %v955 = vadd.f32 %v185, %v952
  %v956 = vxor.u32 %v954, 2147483648
  %v957 = vxor.u32 %v955, 2147483648
  %v958 = vmul.f32 %v956, 1.442695
  %v959 = vpow.pop %v958
  %v960 = vmul.f32 %v957, 1.442695
  %v961 = vpow.pop %v960
  %v962 = vadd.f32 %v959, 1.0
  %v963 = vadd.f32 %v961, 1.0
  %v964 = vrcp.pop %v962
  %v965 = vmul.f32 1.0, %v964
  %v966 = vrcp.pop %v963
  %v967 = vmul.f32 1.0, %v966
  %v968 = vtanh.pop %v954
  %v969 = vmul.f32 %v965, %v866
  %971 = vrot.lane.b32.xlu0 %v968, 56
  %v972 = vpop.permute.xlu0 %971
  %v974 = vmul.f32 %v965, %v972
  %976 = vrot.lane.b32.xlu0 %v974, 36
  %v977 = vpop.permute.xlu0 %976
  %v979 = vadd.f32 %v969, %v977
  %v980 = vtanh.pop %v979
  %982 = vrot.lane.b32.xlu0 %v980, 72
  %v983 = vpop.permute.xlu0 %982
  %v985 = vmul.f32 %v965, %v983
  %v986 = vmul.f32 %v967, %v983
  %989 = vrot.lane.b32.xlu0 %v985, 20
  %v990 = vpop.permute.xlu0 %989
  %991 = vrot.lane.b32.xlu0 %v986, 20
  %v992 = vpop.permute.xlu0 %991
  %v993 = vsel %vm314, %v990, %v992
  %v994 = vsel %vm193, %v993, 0
  %996 = vmatprep.subr.mxu0 %v18
  %997 = vmatpush1.msra.mxu0 %v17
  %998 = vmatprep.subr.mxu0 %v20
  %999 = vmatpush1.msra.mxu0 %v19
  %1000 = vmatprep.subr.mxu0 %v22
  %1001 = vmatpush1.msra.mxu0 %v21
  %1002 = vmatprep.subr.mxu0 %v24
  %1003 = vmatpush1.msra.mxu0 %v23
  %1004 = vmatprep.subr.mxu0 %v202
  %1005 = vmatpush1.msra.mxu0 %v199
  %1006 = vmatprep.subr.mxu0 0.0
  %1007 = vmatpush1.msra.mxu0 0.0
  %1008 = vmatprep.subr.mxu0 0.0
  %1009 = vmatpush1.msra.mxu0 0.0
  %1010 = vmatprep.subr.mxu0 0.0
  %1011 = vmatpush1.msra.mxu0 0.0
  %1012 = vmatprep.subr.mxu0 0.0
  %1013 = vmatpush1.msra.mxu0 0.0
  %1014 = vmatprep.subr.mxu0 0.0
  %1015 = vmatpush1.msra.mxu0 0.0
  %1016 = vmatprep.subr.mxu0 0.0
  %1017 = vmatpush1.msra.mxu0 0.0
  %1018 = vmatprep.subr.mxu0 0.0
  %1019 = vmatpush1.msra.mxu0 0.0
  %1020 = vmatprep.subr.mxu0 0.0
  %1021 = vmatpush1.msra.mxu0 0.0
  %1022 = vmatprep.subr.mxu0 0.0
  %1023 = vmatpush1.msra.mxu0 0.0
  %1024 = vmatprep.subr.mxu0 0.0
  %1025 = vmatpush1.msra.mxu0 0.0
  %1026 = vmatprep.subr.mxu0 0.0
  %1027 = vmatpush1.msra.mxu0 0.0
  %1028 = vmatprep.subr.mxu0 0.0
  %1029 = vmatpush1.msra.mxu0 0.0
  %1030 = vmatprep.subr.mxu0 0.0
  %1031 = vmatpush1.msra.mxu0 0.0
  %1032 = vmatprep.subr.mxu0 0.0
  %1033 = vmatpush1.msra.mxu0 0.0
  %1034 = vmatprep.subr.mxu0 0.0
  %1035 = vmatpush1.msra.mxu0 0.0
  %1036 = vmatprep.subr.mxu0 0.0
  %1037 = vmatpush1.msra.mxu0 0.0
  %1038 = vmatprep.subr.mxu0 0.0
  %1039 = vmatpush1.msra.mxu0 0.0
  %1040 = vmatprep.subr.mxu0 0.0
  %1041 = vmatpush1.msra.mxu0 0.0
  %1042 = vmatprep.subr.mxu0 0.0
  %1043 = vmatpush1.msra.mxu0 0.0
  %1044 = vmatprep.subr.mxu0 0.0
  %1045 = vmatpush1.msra.mxu0 0.0
  %1046 = vmatprep.subr.mxu0 0.0
  %1047 = vmatpush1.msra.mxu0 0.0
  %1048 = vmatprep.subr.mxu0 0.0
  %1049 = vmatpush1.msra.mxu0 0.0
  %1050 = vmatprep.subr.mxu0 0.0
  %1051 = vmatpush1.msra.mxu0 0.0
  %1052 = vmatprep.subr.mxu0 0.0
  %1053 = vmatpush1.msra.mxu0 0.0
  %1054 = vmatprep.subr.mxu0 0.0
  %1055 = vmatpush1.msra.mxu0 0.0
  %1056 = vmatprep.subr.mxu0 0.0
  %1057 = vmatpush1.msra.mxu0 0.0
  %1058 = vmatprep.subr.mxu0 0.0
  %1059 = vmatpush1.msra.mxu0 0.0
  %1060 = vmatprep.mubr.f32.mxu0 0.0
  %1061 = vmatmul.mubr.f32.gmra.mrb[0].mxu0 %v994
  %v1062 = vpop.f32.mrb[0].mxu0
  %v1063 = vadd.f32 0.0, %v1062
  %v1064 = vpop.f32.mrb[0].mxu0
  %v1065 = vadd.f32 0.0, %v1064
  %1066 = vdwg.mxu0
  %v1067 = vadd.f32 %v189, %v1063
  %v1068 = vadd.f32 %v191, %v1065
  %v1069 = vxor.u32 %v1067, 2147483648
  %v1070 = vxor.u32 %v1068, 2147483648
  %v1071 = vmul.f32 %v1069, 1.442695
  %v1072 = vpow.pop %v1071
  %v1073 = vmul.f32 %v1070, 1.442695
  %v1074 = vpow.pop %v1073
  %v1075 = vadd.f32 %v1072, 1.0
  %v1076 = vadd.f32 %v1074, 1.0
  %v1077 = vrcp.pop %v1075
  %v1078 = vmul.f32 1.0, %v1077
  %v1079 = vrcp.pop %v1076
  %v1080 = vmul.f32 1.0, %v1079
  %v1081 = vtanh.pop %v1067
  %v1082 = vmul.f32 %v1078, %v979
  %1084 = vrot.lane.b32.xlu0 %v1081, 56
  %v1085 = vpop.permute.xlu0 %1084
  %v1087 = vmul.f32 %v1078, %v1085
  %1089 = vrot.lane.b32.xlu0 %v1087, 36
  %v1090 = vpop.permute.xlu0 %1089
  %v1092 = vadd.f32 %v1082, %v1090
  %v1093 = vtanh.pop %v1092
  %1095 = vrot.lane.b32.xlu0 %v1093, 72
  %v1096 = vpop.permute.xlu0 %1095
  %v1098 = vmul.f32 %v1078, %v1096
  %v1099 = vmul.f32 %v1080, %v1096
  %v1100 = vld [vmem:[%s1 + $0x90] sm:$0xff]
  %v1101 = vld [vmem:[%s1 + $0xa0] sm:$0xff]
  %v1102 = vld [vmem:[%s1 + $0xb0] sm:$0xff]
  %v1103 = vld [vmem:[%s1 + $0xc0] sm:$0xff]
  %v1104 = vld [vmem:[%s1 + $0xd0] sm:$0xf]
  %v1105 = vld [vmem:[%s1 + $0xe0] ss:$0 sm:$0xff]
  %v1106 = vld [vmem:[%s1 + $0xf0] sm:$0xff]
  %v1107 = vld [vmem:[%s1 + $0x100] sm:$0x1]
  %v1108 = vld [vmem:[%s1 + $0x110] ss:$0 sm:$0xff]
  %1111 = vrot.lane.b32.xlu0 %v1098, 20
  %v1112 = vpop.permute.xlu0 %1111
  %1113 = vrot.lane.b32.xlu0 %v1099, 20
  %v1114 = vpop.permute.xlu0 %1113
  %v1115 = vsel %vm314, %v1112, %v1114
  %v1116 = vsel %vm193, %v1115, 0
  %v1119 = vsel %vm197, %v1104, 0
  %1121 = vmatprep.subr.mxu0 0.0
  %1122 = vmatpush1.msra.mxu0 %v1100
  %1123 = vmatprep.subr.mxu0 0.0
  %1124 = vmatpush1.msra.mxu0 %v1101
  %1125 = vmatprep.subr.mxu0 0.0
  %1126 = vmatpush1.msra.mxu0 %v1102
  %1127 = vmatprep.subr.mxu0 0.0
  %1128 = vmatpush1.msra.mxu0 %v1103
  %1129 = vmatprep.subr.mxu0 0.0
  %1130 = vmatpush1.msra.mxu0 %v1119
  %1131 = vmatprep.subr.mxu0 0.0
  %1132 = vmatpush1.msra.mxu0 0.0
  %1133 = vmatprep.subr.mxu0 0.0
  %1134 = vmatpush1.msra.mxu0 0.0
  %1135 = vmatprep.subr.mxu0 0.0
  %1136 = vmatpush1.msra.mxu0 0.0
  %1137 = vmatprep.subr.mxu0 0.0
  %1138 = vmatpush1.msra.mxu0 0.0
  %1139 = vmatprep.subr.mxu0 0.0
  %1140 = vmatpush1.msra.mxu0 0.0
  %1141 = vmatprep.subr.mxu0 0.0
  %1142 = vmatpush1.msra.mxu0 0.0
  %1143 = vmatprep.subr.mxu0 0.0
  %1144 = vmatpush1.msra.mxu0 0.0
  %1145 = vmatprep.subr.mxu0 0.0
  %1146 = vmatpush1.msra.mxu0 0.0
  %1147 = vmatprep.subr.mxu0 0.0
  %1148 = vmatpush1.msra.mxu0 0.0
  %1149 = vmatprep.subr.mxu0 0.0
  %1150 = vmatpush1.msra.mxu0 0.0
  %1151 = vmatprep.subr.mxu0 0.0
  %1152 = vmatpush1.msra.mxu0 0.0
  %1153 = vmatprep.subr.mxu0 0.0
  %1154 = vmatpush1.msra.mxu0 0.0
  %1155 = vmatprep.subr.mxu0 0.0
  %1156 = vmatpush1.msra.mxu0 0.0
  %1157 = vmatprep.subr.mxu0 0.0
  %1158 = vmatpush1.msra.mxu0 0.0
  %1159 = vmatprep.subr.mxu0 0.0
  %1160 = vmatpush1.msra.mxu0 0.0
  %1161 = vmatprep.subr.mxu0 0.0
  %1162 = vmatpush1.msra.mxu0 0.0
  %1163 = vmatprep.subr.mxu0 0.0
  %1164 = vmatpush1.msra.mxu0 0.0
  %1165 = vmatprep.subr.mxu0 0.0
  %1166 = vmatpush1.msra.mxu0 0.0
  %1167 = vmatprep.subr.mxu0 0.0
  %1168 = vmatpush1.msra.mxu0 0.0
  %1169 = vmatprep.subr.mxu0 0.0
  %1170 = vmatpush1.msra.mxu0 0.0
  %1171 = vmatprep.subr.mxu0 0.0
  %1172 = vmatpush1.msra.mxu0 0.0
  %1173 = vmatprep.subr.mxu0 0.0
  %1174 = vmatpush1.msra.mxu0 0.0
  %1175 = vmatprep.subr.mxu0 0.0
  %1176 = vmatpush1.msra.mxu0 0.0
  %1177 = vmatprep.subr.mxu0 0.0
  %1178 = vmatpush1.msra.mxu0 0.0
  %1179 = vmatprep.subr.mxu0 0.0
  %1180 = vmatpush1.msra.mxu0 0.0
  %1181 = vmatprep.subr.mxu0 0.0
  %1182 = vmatpush1.msra.mxu0 0.0
  %1183 = vmatprep.subr.mxu0 0.0
  %1184 = vmatpush1.msra.mxu0 0.0
  %1185 = vmatprep.mubr.f32.mxu0 0.0
  %1186 = vmatmul.mubr.f32.gmra.mrb[0].mxu0 %v1116
  %v1187 = vpop.f32.mrb[0].mxu0
  %v1188 = vadd.f32 %v1105, %v1187
  %v1189 = vpop.f32.mrb[0].mxu0
  %1190 = vdwg.mxu0
  %v1191 = vmax.f32 %v1188, 0.0
  %vm1192 = vcmask 72704
  %v1194 = vsel %vm1192, %v1191, 0
  %vm1196 = vcmask 1040384
  %v1198 = vsel %vm1196, %v1107, 0
  %1200 = vmatprep.subr.mxu0 0.0
  %1201 = vmatpush1.msra.mxu0 %v1106
  %1202 = vmatprep.subr.mxu0 0.0
  %1203 = vmatpush1.msra.mxu0 %v1198
  %1204 = vmatprep.subr.mxu0 0.0
  %1205 = vmatpush1.msra.mxu0 0.0
  %1206 = vmatprep.subr.mxu0 0.0
  %1207 = vmatpush1.msra.mxu0 0.0
  %1208 = vmatprep.subr.mxu0 0.0
  %1209 = vmatpush1.msra.mxu0 0.0
  %1210 = vmatprep.subr.mxu0 0.0
  %1211 = vmatpush1.msra.mxu0 0.0
  %1212 = vmatprep.subr.mxu0 0.0
  %1213 = vmatpush1.msra.mxu0 0.0
  %1214 = vmatprep.subr.mxu0 0.0
  %1215 = vmatpush1.msra.mxu0 0.0
  %1216 = vmatprep.subr.mxu0 0.0
  %1217 = vmatpush1.msra.mxu0 0.0
  %1218 = vmatprep.subr.mxu0 0.0
  %1219 = vmatpush1.msra.mxu0 0.0
  %1220 = vmatprep.subr.mxu0 0.0
  %1221 = vmatpush1.msra.mxu0 0.0
  %1222 = vmatprep.subr.mxu0 0.0
  %1223 = vmatpush1.msra.mxu0 0.0
  %1224 = vmatprep.subr.mxu0 0.0
  %1225 = vmatpush1.msra.mxu0 0.0
  %1226 = vmatprep.subr.mxu0 0.0
  %1227 = vmatpush1.msra.mxu0 0.0
  %1228 = vmatprep.subr.mxu0 0.0
  %1229 = vmatpush1.msra.mxu0 0.0
  %1230 = vmatprep.subr.mxu0 0.0
  %1231 = vmatpush1.msra.mxu0 0.0
  %1232 = vmatprep.subr.mxu0 0.0
  %1233 = vmatpush1.msra.mxu0 0.0
  %1234 = vmatprep.subr.mxu0 0.0
  %1235 = vmatpush1.msra.mxu0 0.0
  %1236 = vmatprep.subr.mxu0 0.0
  %1237 = vmatpush1.msra.mxu0 0.0
  %1238 = vmatprep.subr.mxu0 0.0
  %1239 = vmatpush1.msra.mxu0 0.0
  %1240 = vmatprep.subr.mxu0 0.0
  %1241 = vmatpush1.msra.mxu0 0.0
  %1242 = vmatprep.subr.mxu0 0.0
  %1243 = vmatpush1.msra.mxu0 0.0
  %1244 = vmatprep.subr.mxu0 0.0
  %1245 = vmatpush1.msra.mxu0 0.0
  %1246 = vmatprep.subr.mxu0 0.0
  %1247 = vmatpush1.msra.mxu0 0.0
  %1248 = vmatprep.subr.mxu0 0.0
  %1249 = vmatpush1.msra.mxu0 0.0
  %1250 = vmatprep.subr.mxu0 0.0
  %1251 = vmatpush1.msra.mxu0 0.0
  %1252 = vmatprep.subr.mxu0 0.0
  %1253 = vmatpush1.msra.mxu0 0.0
  %1254 = vmatprep.subr.mxu0 0.0
  %1255 = vmatpush1.msra.mxu0 0.0
  %1256 = vmatprep.subr.mxu0 0.0
  %1257 = vmatpush1.msra.mxu0 0.0
  %1258 = vmatprep.subr.mxu0 0.0
  %1259 = vmatpush1.msra.mxu0 0.0
  %1260 = vmatprep.subr.mxu0 0.0
  %1261 = vmatpush1.msra.mxu0 0.0
  %1262 = vmatprep.subr.mxu0 0.0
  %1263 = vmatpush1.msra.mxu0 0.0
  %1264 = vmatprep.mubr.f32.mxu0 0.0
  %1265 = vmatmul.mubr.f32.gmra.mrb[0].mxu0 %v1194
  %v1266 = vpop.f32.mrb[0].mxu0
  %v1267 = vadd.f32 %v1108, %v1266
  %v1268 = vpop.f32.mrb[0].mxu0
  %1269 = vdwg.mxu0
  %1271 = vrot.lane.b32.xlu0 %v1267, 1
  %v1272 = vpop.permute.xlu0 %1271
  %v1274 = vsub.f32 %v1267, %v1272
  %v1275 = vxor.u32 %v1274, 2147483648
  %v1276 = vmul.f32 %v1275, 1.442695
  %v1277 = vpow.pop %v1276
  %v1278 = vadd.f32 %v1277, 1.0
  %v1279 = vrcp.pop %v1278
  %v1280 = vmul.f32 1.0, %v1279
  %v1281 = vsub.f32 1.0, %v1280
  %1283 = vrot.lane.b32.xlu0 %v1281, 127
  %v1284 = vpop.permute.xlu0 %1283
  %vm1286 = vcmask 7168
  %v1287 = vsel %vm1286, %v1284, %v1280
  %vm1288 = vcmask 15360
  %1289 = vst.msk [vmem:[%s2] sm:$0xff] %vm1288, %v1287
  // Predicated region
  $region10: #{bin_prov_rnn.1} parent=0 // pred_check
    _
  $region11: #{bin_prov_rnn.1} parent=0 // pred_check_branch
    %1291 = sbr.rel (0) target = $region13
  $region12: #{bin_prov_rnn.1} parent=0 // pred_region
    _
  $region13: #{bin_prov_rnn.1} parent=0 // pred_fallthru
    _
  // Predicated region
  $region14: #{bin_prov_rnn.1} parent=0 // pred_check
    _
  $region15: #{bin_prov_rnn.1} parent=0 // pred_check_branch
    %1293 = sbr.rel (0) target = $region17
  $region16: #{bin_prov_rnn.1} parent=0 // pred_region
    _
  $region17: #{bin_prov_rnn.1} parent=0 // pred_fallthru
    _

</llo_original>
